<compile_context>
chip_gen: v7x
topology: tpu7x:2x2x1
jax: 0.10.0
libtpu: 0.0.40
codegen_flags: <defaults>
</compile_context>

<pallas_src>
import jax
import jax.numpy as jnp
from jax import lax
from jax.experimental import pallas as pl
from jax.experimental.pallas import tpu as pltpu

TOL = 1e-4
MAX_ITER = 1

_VMEM_LIMIT = 32 * 1024 * 1024  # default scoped limit on v6e/v7x, < physical everywhere


def _pick_tb(B, N):
    """Batch tile: ~8 MiB of double-buffered per-step tiles, block-shape legal."""
    bytes_per_row = 4 * (N * N + 4 * N)                 # J row + (x, z, g, out) rows, f32
    cap = max(8, (8 * 1024 * 1024) // (2 * bytes_per_row))
    cap = min(cap, 1024)
    if B <= cap:
        return B                                        # single-tile block == full dim: legal
    for tb in range(cap - cap % 8, 7, -8):              # need TB % 8 == 0 when TB < B
        if B % tb == 0:
            return tb
    return B                                            # fallback: whole batch in one tile


# ---------------------------------------------------------------------------
# Fused per-iteration kernel: residual g and lane-dense Jacobian J.
#   g       = z - tanh(z @ W^T + x)
#   J_flat  = eye_flat - s @ Ew          with s = 1 - tanh^2(.),
#   Ew[i, i*N + j] = W[i, j]  ==>  J[b, i, j] = I[i, j] - s[b, i] * W[i, j]
# ---------------------------------------------------------------------------
def _residual_jac_math(z, x, w, ew, eye_flat):
    u = lax.dot_general(z, w, (((1,), (1,)), ((), ())),
                        preferred_element_type=jnp.float32) + x      # (TB, N) = z @ W^T + x
    t = jnp.tanh(u)
    g = z - t
    s = 1.0 - t * t
    # Lane-dense Jacobian build: one small MXU op, output already (TB, N*N).
    jf = eye_flat - jnp.dot(s, ew, preferred_element_type=jnp.float32)
    return g, jf


def _residual_jac_first_kernel(x_ref, w_ref, ew_ref, eye_ref,
                               z0_ref, g_ref, jf_ref):
    x = x_ref[...]
    z = jnp.tanh(x)                                     # z0 = tanh(x) fused in-kernel
    g, jf = _residual_jac_math(z, x, w_ref[...], ew_ref[...], eye_ref[...])
    z0_ref[...] = z.astype(z0_ref.dtype)
    g_ref[...] = g.astype(g_ref.dtype)
    jf_ref[...] = jf.astype(jf_ref.dtype)


def _residual_jac_next_kernel(z_ref, x_ref, w_ref, ew_ref, eye_ref,
                              g_ref, jf_ref):
    g, jf = _residual_jac_math(z_ref[...], x_ref[...], w_ref[...],
                               ew_ref[...], eye_ref[...])
    g_ref[...] = g.astype(g_ref.dtype)
    jf_ref[...] = jf.astype(jf_ref.dtype)


def _residual_and_jacobian(x, W, Ew, eye_flat, z=None):
    B, N = x.shape
    TB = _pick_tb(B, N)
    grid = (B // TB,)
    row = pl.BlockSpec((TB, N), lambda i: (i, 0))
    jrow = pl.BlockSpec((TB, N * N), lambda i: (i, 0))          # lane-dense J store
    w_spec = pl.BlockSpec((N, N), lambda i: (0, 0))             # resident across the grid
    ew_spec = pl.BlockSpec((N, N * N), lambda i: (0, 0))
    eye_spec = pl.BlockSpec((1, N * N), lambda i: (0, 0))
    cp = pltpu.CompilerParams(dimension_semantics=("parallel",),
                              vmem_limit_bytes=_VMEM_LIMIT)
    if z is None:
        z0, g, jf = pl.pallas_call(
            _residual_jac_first_kernel,
            grid=grid,
            out_shape=(jax.ShapeDtypeStruct((B, N), jnp.float32),       # z0
                       jax.ShapeDtypeStruct((B, N), jnp.float32),       # g
                       jax.ShapeDtypeStruct((B, N * N), jnp.float32)),  # J flattened
            in_specs=[row, w_spec, ew_spec, eye_spec],
            out_specs=(row, row, jrow),
            compiler_params=cp,
        )(x, W, Ew, eye_flat)
        z_used = z0
    else:
        g, jf = pl.pallas_call(
            _residual_jac_next_kernel,
            grid=grid,
            out_shape=(jax.ShapeDtypeStruct((B, N), jnp.float32),       # g
                       jax.ShapeDtypeStruct((B, N * N), jnp.float32)),  # J flattened
            in_specs=[row, row, w_spec, ew_spec, eye_spec],
            out_specs=(row, jrow),
            compiler_params=cp,
        )(z, x, W, Ew, eye_flat)
        z_used = z                                              # no redundant z writeback
    J = jf.reshape(B, N, N)                                     # row-major view, free
    return z_used, g, J


# ---------------------------------------------------------------------------
# Final kernel: out = tanh(z @ W^T + x)   (the post-loop  z - implicit_model(z, x))
# ---------------------------------------------------------------------------
def _affine_tanh_kernel(z_ref, x_ref, w_ref, out_ref):
    u = lax.dot_general(z_ref[...], w_ref[...], (((1,), (1,)), ((), ())),
                        preferred_element_type=jnp.float32) + x_ref[...]
    out_ref[...] = jnp.tanh(u).astype(out_ref.dtype)


def _affine_tanh(z, x, W):
    B, N = z.shape
    TB = _pick_tb(B, N)
    grid = (B // TB,)
    row = pl.BlockSpec((TB, N), lambda i: (i, 0))
    return pl.pallas_call(
        _affine_tanh_kernel,
        grid=grid,
        out_shape=jax.ShapeDtypeStruct((B, N), jnp.float32),
        in_specs=[row, row, pl.BlockSpec((N, N), lambda i: (0, 0))],
        out_specs=row,
        compiler_params=pltpu.CompilerParams(dimension_semantics=("parallel",),
                                             vmem_limit_bytes=_VMEM_LIMIT),
    )(z, x, W)


# ---------------------------------------------------------------------------
# Full forward
# ---------------------------------------------------------------------------
def fixed_point_layer_forward(x, W, tol=TOL, max_iter=MAX_ITER):
    x = x.astype(jnp.float32)
    W = W.astype(jnp.float32)
    B, N = x.shape

    eye = jnp.eye(N, dtype=jnp.float32)
    eye_flat = eye.reshape(1, N * N)
    # Ew[i, i*N + j] = W[i, j]: lets the kernel build J with one lane-dense MXU op.
    Ew = jnp.repeat(eye, N, axis=1) * W.reshape(1, N * N)

    z = None
    done = jnp.array(False)
    for _ in range(max_iter):
        z_used, g, J = _residual_and_jacobian(x, W, Ew, eye_flat, z=z)
        err = jnp.sqrt(jnp.sum(g * g))                  # torch.norm(g) over the whole batch
        converged = err < tol
        # TODO(synk): batched LU solve with pivoting has no clean Pallas equivalent;
        # kept in plain JAX (matches torch.linalg.solve).
        dz = jnp.linalg.solve(J, g[..., None])[..., 0]
        take_step = jnp.logical_and(jnp.logical_not(done), jnp.logical_not(converged))
        z = jnp.where(take_step, z_used - dz, z_used)
        done = jnp.logical_or(done, converged)

    if z is None:                                       # max_iter == 0 edge case
        z = jnp.tanh(x)
    # TODO(synk): z.register_hook(...) only modifies the backward pass; forward output is:
    return _affine_tanh(z, x, W)


# ---------------------------------------------------------------------------
# Pure-JAX reference (mirrors the PyTorch math) for a sanity check.
# ---------------------------------------------------------------------------
def _reference_forward(x, W, tol=TOL, max_iter=MAX_ITER):
    N = W.shape[0]
    z = jnp.tanh(x)
    done = jnp.array(False)
    for _ in range(max_iter):
        t = jnp.tanh(z @ W.T + x)
        g = z - t
        err = jnp.linalg.norm(g)
        s = 1.0 - t * t
        J = jnp.eye(N)[None] - s[:, :, None] * W[None]
        dz = jnp.linalg.solve(J, g[..., None])[..., 0]
        take = jnp.logical_and(jnp.logical_not(done), err >= tol)
        z = jnp.where(take, z - dz, z)
        done = jnp.logical_or(done, err < tol)
    return jnp.tanh(z @ W.T + x)


if __name__ == "__main__":
    key = jax.random.PRNGKey(0)
    k_w, k_x = jax.random.split(key)

    B, N = 4, 32
    # Deterministic parameter init (module __init__ takes W of shape (N, N)).
    W = 0.1 * jax.random.normal(k_w, (N, N), dtype=jnp.float32)
    x = jax.random.normal(k_x, (B, N), dtype=jnp.float32)

    out = jax.jit(fixed_point_layer_forward)(x, W)
    out = jax.block_until_ready(out)

    ref = _reference_forward(x, W)
    assert out.shape == (B, N) and out.dtype == jnp.float32
    assert jnp.allclose(out, ref, atol=1e-4, rtol=1e-4), "mismatch vs reference"

    print("KERNEL_OK")
</pallas_src>

<mosaic_0001>
module attributes {stable_mosaic.version = 11 : i64} {
  func.func @_residual_jac_first_kernel(%arg0: i32, %arg1: memref<4x32xf32, #tpu.memory_space<vmem>>, %arg2: memref<32x32xf32, #tpu.memory_space<vmem>>, %arg3: memref<32x1024xf32, #tpu.memory_space<vmem>>, %arg4: memref<1x1024xf32, #tpu.memory_space<vmem>>, %arg5: memref<4x32xf32, #tpu.memory_space<vmem>>, %arg6: memref<4x32xf32, #tpu.memory_space<vmem>>, %arg7: memref<4x1024xf32, #tpu.memory_space<vmem>>) attributes {dimension_semantics = [#tpu.dimension_semantics<parallel>], iteration_bounds = array<i64: 1>, scalar_prefetch = 0 : i64, scratch_operands = 0 : i64, tpu.core_type = #tpu.core_type<tc>, window_params = [{transform_indices = @transform_0, window_bounds = array<i64: 4, 32>}, {pipeline_mode = #tpu.pipeline_mode<synchronous>, transform_indices = @transform_1, window_bounds = array<i64: 32, 32>}, {pipeline_mode = #tpu.pipeline_mode<synchronous>, transform_indices = @transform_2, window_bounds = array<i64: 32, 1024>}, {pipeline_mode = #tpu.pipeline_mode<synchronous>, transform_indices = @transform_3, window_bounds = array<i64: 1, 1024>}, {transform_indices = @transform_4, window_bounds = array<i64: 4, 32>}, {transform_indices = @transform_5, window_bounds = array<i64: 4, 32>}, {transform_indices = @transform_6, window_bounds = array<i64: 4, 1024>}]} {
    %c0 = arith.constant 0 : index
    %c0_0 = arith.constant 0 : index
    %0 = vector.load %arg1[%c0, %c0_0] : memref<4x32xf32, #tpu.memory_space<vmem>>, vector<4x32xf32>
    %1 = math.tanh %0 : vector<4x32xf32>
    %c0_1 = arith.constant 0 : index
    %c0_2 = arith.constant 0 : index
    %2 = vector.load %arg2[%c0_1, %c0_2] : memref<32x32xf32, #tpu.memory_space<vmem>>, vector<32x32xf32>
    %c0_3 = arith.constant 0 : index
    %c0_4 = arith.constant 0 : index
    %3 = vector.load %arg3[%c0_3, %c0_4] : memref<32x1024xf32, #tpu.memory_space<vmem>>, vector<32x1024xf32>
    %c0_5 = arith.constant 0 : index
    %c0_6 = arith.constant 0 : index
    %4 = vector.load %arg4[%c0_5, %c0_6] : memref<1x1024xf32, #tpu.memory_space<vmem>>, vector<1x1024xf32>
    %cst = arith.constant dense<0.000000e+00> : vector<4x32xf32>
    %5 = tpu.matmul %1, %2, %cst {dimension_numbers = #tpu.dot_dimension_numbers<[1], [1], [0], [0], [0, 0, 1, 0], [], []>} : vector<4x32xf32>, vector<32x32xf32>, vector<4x32xf32> -> vector<4x32xf32>
    %6 = arith.addf %5, %0 : vector<4x32xf32>
    %7 = math.tanh %6 : vector<4x32xf32>
    %8 = arith.subf %1, %7 : vector<4x32xf32>
    %9 = arith.mulf %7, %7 : vector<4x32xf32>
    %cst_7 = arith.constant 1.000000e+00 : f32
    %10 = vector.broadcast %cst_7 : f32 to vector<4x32xf32>
    %11 = arith.subf %10, %9 : vector<4x32xf32>
    %cst_8 = arith.constant dense<0.000000e+00> : vector<4x1024xf32>
    %12 = tpu.matmul %11, %3, %cst_8 {dimension_numbers = #tpu.dot_dimension_numbers<[1], [0], [0], [1], [0, 0, 1, 1], [], []>} : vector<4x32xf32>, vector<32x1024xf32>, vector<4x1024xf32> -> vector<4x1024xf32>
    %13 = vector.broadcast %4 : vector<1x1024xf32> to vector<4x1024xf32>
    %14 = arith.subf %13, %12 : vector<4x1024xf32>
    %c0_9 = arith.constant 0 : index
    %c0_10 = arith.constant 0 : index
    %15 = vector.load %arg5[%c0_9, %c0_10] : memref<4x32xf32, #tpu.memory_space<vmem>>, vector<4x32xf32>
    tpu.vector_store %arg5[%c0_9, %c0_10], %1 {strides = array<i32>} : memref<4x32xf32, #tpu.memory_space<vmem>>, vector<4x32xf32>,
    %c0_11 = arith.constant 0 : index
    %c0_12 = arith.constant 0 : index
    %16 = vector.load %arg6[%c0_11, %c0_12] : memref<4x32xf32, #tpu.memory_space<vmem>>, vector<4x32xf32>
    tpu.vector_store %arg6[%c0_11, %c0_12], %8 {strides = array<i32>} : memref<4x32xf32, #tpu.memory_space<vmem>>, vector<4x32xf32>,
    %c0_13 = arith.constant 0 : index
    %c0_14 = arith.constant 0 : index
    %17 = vector.load %arg7[%c0_13, %c0_14] : memref<4x1024xf32, #tpu.memory_space<vmem>>, vector<4x1024xf32>
    tpu.vector_store %arg7[%c0_13, %c0_14], %14 {strides = array<i32>} : memref<4x1024xf32, #tpu.memory_space<vmem>>, vector<4x1024xf32>,
    return
  }
  func.func @transform_0(%arg0: i32) -> (i32, i32) {
    %c0_i32 = arith.constant 0 : i32
    %c0_i32_0 = arith.constant 0 : i32
    return %arg0, %c0_i32 : i32, i32
  }
  func.func @transform_1(%arg0: i32) -> (i32, i32) {
    %c0_i32 = arith.constant 0 : i32
    %c0_i32_0 = arith.constant 0 : i32
    %c0_i32_1 = arith.constant 0 : i32
    return %c0_i32, %c0_i32_0 : i32, i32
  }
  func.func @transform_2(%arg0: i32) -> (i32, i32) {
    %c0_i32 = arith.constant 0 : i32
    %c0_i32_0 = arith.constant 0 : i32
    %c0_i32_1 = arith.constant 0 : i32
    return %c0_i32, %c0_i32_0 : i32, i32
  }
  func.func @transform_3(%arg0: i32) -> (i32, i32) {
    %c0_i32 = arith.constant 0 : i32
    %c0_i32_0 = arith.constant 0 : i32
    %c0_i32_1 = arith.constant 0 : i32
    return %c0_i32, %c0_i32_0 : i32, i32
  }
  func.func @transform_4(%arg0: i32) -> (i32, i32) {
    %c0_i32 = arith.constant 0 : i32
    %c0_i32_0 = arith.constant 0 : i32
    return %arg0, %c0_i32 : i32, i32
  }
  func.func @transform_5(%arg0: i32) -> (i32, i32) {
    %c0_i32 = arith.constant 0 : i32
    %c0_i32_0 = arith.constant 0 : i32
    return %arg0, %c0_i32 : i32, i32
  }
  func.func @transform_6(%arg0: i32) -> (i32, i32) {
    %c0_i32 = arith.constant 0 : i32
    %c0_i32_0 = arith.constant 0 : i32
    return %arg0, %c0_i32 : i32, i32
  }
}

module attributes {stable_mosaic.version = 11 : i64} {
  func.func @_affine_tanh_kernel(%arg0: i32, %arg1: memref<4x32xf32, #tpu.memory_space<vmem>>, %arg2: memref<4x32xf32, #tpu.memory_space<vmem>>, %arg3: memref<32x32xf32, #tpu.memory_space<vmem>>, %arg4: memref<4x32xf32, #tpu.memory_space<vmem>>) attributes {dimension_semantics = [#tpu.dimension_semantics<parallel>], iteration_bounds = array<i64: 1>, scalar_prefetch = 0 : i64, scratch_operands = 0 : i64, tpu.core_type = #tpu.core_type<tc>, window_params = [{transform_indices = @transform_0, window_bounds = array<i64: 4, 32>}, {transform_indices = @transform_1, window_bounds = array<i64: 4, 32>}, {pipeline_mode = #tpu.pipeline_mode<synchronous>, transform_indices = @transform_2, window_bounds = array<i64: 32, 32>}, {transform_indices = @transform_3, window_bounds = array<i64: 4, 32>}]} {
    %c0 = arith.constant 0 : index
    %c0_0 = arith.constant 0 : index
    %0 = vector.load %arg1[%c0, %c0_0] : memref<4x32xf32, #tpu.memory_space<vmem>>, vector<4x32xf32>
    %c0_1 = arith.constant 0 : index
    %c0_2 = arith.constant 0 : index
    %1 = vector.load %arg3[%c0_1, %c0_2] : memref<32x32xf32, #tpu.memory_space<vmem>>, vector<32x32xf32>
    %cst = arith.constant dense<0.000000e+00> : vector<4x32xf32>
    %2 = tpu.matmul %0, %1, %cst {dimension_numbers = #tpu.dot_dimension_numbers<[1], [1], [0], [0], [0, 0, 1, 0], [], []>} : vector<4x32xf32>, vector<32x32xf32>, vector<4x32xf32> -> vector<4x32xf32>
    %c0_3 = arith.constant 0 : index
    %c0_4 = arith.constant 0 : index
    %3 = vector.load %arg2[%c0_3, %c0_4] : memref<4x32xf32, #tpu.memory_space<vmem>>, vector<4x32xf32>
    %4 = arith.addf %2, %3 : vector<4x32xf32>
    %5 = math.tanh %4 : vector<4x32xf32>
    %c0_5 = arith.constant 0 : index
    %c0_6 = arith.constant 0 : index
    %6 = vector.load %arg4[%c0_5, %c0_6] : memref<4x32xf32, #tpu.memory_space<vmem>>, vector<4x32xf32>
    tpu.vector_store %arg4[%c0_5, %c0_6], %5 {strides = array<i32>} : memref<4x32xf32, #tpu.memory_space<vmem>>, vector<4x32xf32>,
    return
  }
  func.func @transform_0(%arg0: i32) -> (i32, i32) {
    %c0_i32 = arith.constant 0 : i32
    %c0_i32_0 = arith.constant 0 : i32
    return %arg0, %c0_i32 : i32, i32
  }
  func.func @transform_1(%arg0: i32) -> (i32, i32) {
    %c0_i32 = arith.constant 0 : i32
    %c0_i32_0 = arith.constant 0 : i32
    return %arg0, %c0_i32 : i32, i32
  }
  func.func @transform_2(%arg0: i32) -> (i32, i32) {
    %c0_i32 = arith.constant 0 : i32
    %c0_i32_0 = arith.constant 0 : i32
    %c0_i32_1 = arith.constant 0 : i32
    return %c0_i32, %c0_i32_0 : i32, i32
  }
  func.func @transform_3(%arg0: i32) -> (i32, i32) {
    %c0_i32 = arith.constant 0 : i32
    %c0_i32_0 = arith.constant 0 : i32
    return %arg0, %c0_i32 : i32, i32
  }
}

</mosaic_0001>

<llo_original>
// kernel: mul.6
$region0: #{mul.6}
  %s0 = inlined_call_operand.vmem [shape: f32[32,32], index: 0, kind: input, shape index: {}]
  %s1 = inlined_call_operand.vmem [shape: f32[1024], index: 1, kind: output, shape index: {}]
  %v2 = vld [vmem:[%s0] ss:$4 sm:$0xff]
  %vm3 = vcmask 261120
  %4 = vst.msk [vmem:[%s1] sm:$0xff] %vm3, %v2
  %s5 = scalar_lea.vmem %s0, 3
  %v6 = vld [vmem:[%s5] ss:$4 sm:$0xff]
  %7 = vrot.lane.b32.xlu0 %v6, 96
  %v8 = vpop.permute.xlu0 %7
  %vm9 = vcmask 1048320
  %10 = vst.msk [vmem:[%s1] sm:$0xff] %vm9, %v8
  %s11 = scalar_lea.vmem %s0, 2
  %v12 = vld [vmem:[%s11] ss:$4 sm:$0xff]
  %13 = vrot.lane.b32.xlu0 %v12, 64
  %v14 = vpop.permute.xlu0 %13
  %vm15 = vcmask 785920
  %16 = vst.msk [vmem:[%s1] sm:$0xff] %vm15, %v14
  %s17 = scalar_lea.vmem %s0, 1
  %v18 = vld [vmem:[%s17] ss:$4 sm:$0xff]
  %19 = vrot.lane.b32.xlu0 %v18, 32
  %v20 = vpop.permute.xlu0 %19
  %vm21 = vcmask 523520
  %22 = vst.msk [vmem:[%s1] sm:$0xff] %vm21, %v20

// kernel: custom-call.8
$region0: #{custom-call.8}
  %s0 = inlined_call_operand.vmem [shape: f32[4,32,32], index: 0, kind: input, shape index: {}]
  %s1 = inlined_call_operand.vmem [shape: f32[4,32,32], index: 1, kind: output, shape index: {0}]
  %s2 = inlined_call_operand.hbm [shape: s32[4,32], index: 2, kind: output, shape index: {1}]
  %s3 = inlined_call_operand.vmem [shape: s32[4,32], index: 3, kind: output, shape index: {2}]
  %4 = xla_tuple %s1, %s2, %s3
  $region1: #{custom-call.8} parent=0
    #allocation0 [shape = 'u8[32768]{0}', space=vmem, size = 0x8000, scoped, tag = 'operand span for operand 0']
    #allocation1 [shape = 'u8[32768]{0}', space=vmem, size = 0x8000, scoped, tag = 'operand span for operand 1']
    #allocation2 [shape = 'u8[4096]{0}', space=vmem, size = 0x1000, scoped, tag = 'operand span for operand 2']
    #allocation3 [shape = 'u8[4096]{0}', space=vmem, size = 0x1000, scoped, tag = 'packed  for operand 2']
    #allocation4 [shape = 's32[2]{0}', space=sflag, size = 0x8, scoped, tag = 'scoped memory for custom-call.8']
    #allocation5 [shape = 'u8[4096]{0}', space=vmem, size = 0x1000, scoped, tag = 'operand span for operand 3']
    #allocation6 [shape = 'u8[4096]{0}', space=vmem, size = 0x1000, scoped, tag = 'packed  for operand 3']
    %5 = vsyncpa [#allocation4], 0
    %s6 = scalar_lea.sflag [#allocation4], 1
    %7 = vsyncpa %s6, 0
    loop: start=0, step=1, limit=6
    $region2: #{custom-call.8} parent=1 // loop_pre_header
      _
    $region3: #{custom-call.8} parent=1 // loop_header
      %s9 = sphi 0, %s13
      %p10 = scmp.ge.s32.totalorder %s9, 6
      %s21 = sphi 0, %s23
      %s24 = sphi 0, %s21
      %s25 = sphi 0, %s24
      %s41 = sphi 0, %s25
      %s49 = sphi 0, %s51
      %s52 = sphi 0, %s49
      %s53 = sphi 0, %s52
      %s69 = sphi 0, %s53
    $region4: #{custom-call.8} parent=1 // loop_header_branch
      %12 = sbr.rel (%p10) target = $region8
    $region5: #{custom-call.8} parent=1 // loop_body
      %s14 = ssub.s32 %s9, 1
      %s15 = ssub.s32 %s9, 2
      %s16 = sadd.s32 %s9, 1
      %s17 = sshrl.u32 %s9, 3
      %s18 = sshrl.u32 %s16, 3
      %s19 = ssub.s32 %s17, %s18
      %p20 = scmp.eq.s32.totalorder %s19, 0
      %s22 = sadd.s32 %s21, 1
      %s23 = scalar_select %p20, %s21, %s22
      %p26 = pneg %p20
      %p27 = scmp.eq.s32.totalorder %s9, 3
      %p28 = por %p26, %p27
      %p29 = scmp.ne.s32.totalorder %s21, %s24
      %p30 = scmp.eq.s32.totalorder %s9, 0
      %p31 = por %p29, %p30
      %p32 = scmp.ne.s32.totalorder %s21, %s24
      %p33 = scmp.eq.s32.totalorder %s14, 3
      %p34 = por %p32, %p33
      %p35 = scmp.ne.s32.totalorder %s24, %s25
      %p36 = scmp.eq.s32.totalorder %s14, 0
      %p37 = por %p35, %p36
      %p38 = scmp.ne.s32.totalorder %s24, %s25
      %p39 = scmp.eq.s32.totalorder %s15, 3
      %p40 = por %p38, %p39
      %p42 = scmp.ne.s32.totalorder %s25, %s41
      %p43 = scmp.eq.s32.totalorder %s15, 0
      %p44 = por %p42, %p43
      %s45 = sshrl.u32 %s9, 3
      %s46 = sshrl.u32 %s16, 3
      %s47 = ssub.s32 %s45, %s46
      %p48 = scmp.eq.s32.totalorder %s47, 0
      %s50 = sadd.s32 %s49, 1
      %s51 = scalar_select %p48, %s49, %s50
      %p54 = pneg %p48
      %p55 = scmp.eq.s32.totalorder %s9, 3
      %p56 = por %p54, %p55
      %p57 = scmp.ne.s32.totalorder %s49, %s52
      %p58 = scmp.eq.s32.totalorder %s9, 0
      %p59 = por %p57, %p58
      %p60 = scmp.ne.s32.totalorder %s49, %s52
      %p61 = scmp.eq.s32.totalorder %s14, 3
      %p62 = por %p60, %p61
      %p63 = scmp.ne.s32.totalorder %s52, %s53
      %p64 = scmp.eq.s32.totalorder %s14, 0
      %p65 = por %p63, %p64
      %p66 = scmp.ne.s32.totalorder %s52, %s53
      %p67 = scmp.eq.s32.totalorder %s15, 3
      %p68 = por %p66, %p67
      %p70 = scmp.ne.s32.totalorder %s53, %s69
      %p71 = scmp.eq.s32.totalorder %s15, 0
      %p72 = por %p70, %p71
      %p73 = scmp.le.s32.totalorder 1, %s9
      %p74 = scmp.lt.s32.totalorder %s9, 5
      %p75 = pnand %p73, %p74
      %p76 = pneg %p75
      // Predicated region
      $region9: #{custom-call.8} parent=5 // pred_check
        _
      $region10: #{custom-call.8} parent=5 // pred_check_branch
        %78 = sbr.rel (%p75) target = $region12
      $region11: #{custom-call.8} parent=5 // pred_region
        %s79 = ssub.s32 %s9, 1
      $region12: #{custom-call.8} parent=5 // pred_fallthru
        _
      %p80 = scmp.lt.s32.totalorder %s9, 4
      // Predicated region
      $region13: #{custom-call.8} parent=5 // pred_check
        %p81 = pneg %p80
      $region14: #{custom-call.8} parent=5 // pred_check_branch
        %83 = sbr.rel (%p81) target = $region16
      $region15: #{custom-call.8} parent=5 // pred_region
        %s84 = sand.u32 %s9, 1
        %s85 = sand.u32 %s9, 1
        %s86 = smul.addr %s85, 32
        %s87 = scalar_lea.vmem [#allocation0], %s86
        %s88 = smul.addr %s9, 32
        %s89 = scalar_lea.vmem %s0, %s88
        // Predicated region
        $region17: #{custom-call.8} parent=15 // pred_check
          _
        $region18: #{custom-call.8} parent=15 // pred_check_branch
          %91 = sbr.rel (0) target = $region20
        $region19: #{custom-call.8} parent=15 // pred_region
          // Predicated region
          $region21: #{custom-call.8} parent=19 // pred_check
            _
          $region22: #{custom-call.8} parent=19 // pred_check_branch
            %93 = sbr.rel (0) target = $region24
          $region23: #{custom-call.8} parent=19 // pred_region
            loop: start=0, step=1, limit=1
            $region25: #{custom-call.8} parent=23 // loop_pre_header
              _
            $region26: #{custom-call.8} parent=23 // loop_header
              %s95 = sphi 0, %s99
              %p96 = scmp.ge.s32.totalorder %s95, 1
              %s100 = sphi %s89, %s89
              %s101 = sphi %s87, %s87
            $region27: #{custom-call.8} parent=23 // loop_header_branch
              %98 = sbr.rel (%p96) target = $region31
            $region28: #{custom-call.8} parent=23 // loop_body
              %v102 = vld [vmem:[%s100] sm:$0xff]
              %103 = vst [vmem:[%s101] sm:$0xff] %v102
              %v104 = vld [vmem:[%s100 + $0x8] sm:$0xff]
              %105 = vst [vmem:[%s101 + $0x8] sm:$0xff] %v104
              %v106 = vld [vmem:[%s100 + $0x10] sm:$0xff]
              %107 = vst [vmem:[%s101 + $0x10] sm:$0xff] %v106
              %v108 = vld [vmem:[%s100 + $0x18] sm:$0xff]
              %109 = vst [vmem:[%s101 + $0x18] sm:$0xff] %v108
            $region29: #{custom-call.8} parent=23 // loop_footer
              %s99 = sadd.s32 1, %s95
            $region30: #{custom-call.8} parent=23 // loop_footer_branch
              %94 = sbr.rel target = $region26
            $region31: #{custom-call.8} parent=23 // loop_exit
              _
          $region24: #{custom-call.8} parent=19 // pred_fallthru
            _
          // Predicated region
          $region32: #{custom-call.8} parent=19 // pred_check
            _
          $region33: #{custom-call.8} parent=19 // pred_check_branch
            %111 = sbr.rel target = $region35
          $region34: #{custom-call.8} parent=19 // pred_region
            _
          $region35: #{custom-call.8} parent=19 // pred_fallthru
            _
        $region20: #{custom-call.8} parent=15 // pred_fallthru
          _
        %112 = vnop
      $region16: #{custom-call.8} parent=5 // pred_fallthru
        _
      %p113 = scmp.le.s32.totalorder 1, %s9
      %p114 = scmp.lt.s32.totalorder %s9, 5
      %p115 = pnand %p113, %p114
      %p116 = pneg %p115
      // Predicated region
      $region36: #{custom-call.8} parent=5 // pred_check
        _
      $region37: #{custom-call.8} parent=5 // pred_check_branch
        %118 = sbr.rel (%p115) target = $region39
      $region38: #{custom-call.8} parent=5 // pred_region
        #allocation7 [shape = 's32[32,128]{1,0}', space=vmem, size = 0x4000, scoped, tag = 'scratch for permutations']
        %s119 = ssub.s32 %s9, 1
        %s120 = sand.u32 %s14, 1
        %s121 = sand.u32 %s14, 1
        %s122 = smul.addr %s121, 32
        %s123 = scalar_lea.vmem [#allocation0], %s122
        %s124 = sand.u32 %s14, 1
        %s125 = sand.u32 %s14, 1
        %s126 = smul.addr %s125, 32
        %s127 = scalar_lea.vmem [#allocation0], %s126
        %s128 = sand.u32 %s14, 1
        %s129 = sand.u32 %s14, 1
        %s130 = smul.addr %s129, 32
        %s131 = scalar_lea.vmem [#allocation1], %s130
        %p132 = pneg %p37
        %p133 = pneg %p34
        %s134 = sand.u32 %s24, 1
        %s135 = scalar_lea.sflag [#allocation4], %s134
        %s136 = sand.u32 %s24, 1
        %s137 = smul.addr %s136, 4
        %s138 = scalar_lea.vmem [#allocation3], %s137
        %p139 = pneg %p65
        %p140 = pneg %p62
        %s141 = sand.u32 %s52, 1
        %s142 = sand.u32 %s52, 1
        %s143 = smul.addr %s142, 4
        %s144 = scalar_lea.vmem [#allocation6], %s143
        %s145 = sshrl.u32 %s14, 3
        %s146 = sshrl.u32 %s14, 3
        %v147 = vld [vmem:[%s123] sm:$0xff]
        %148 = vst [vmem:[%s131] sm:$0xff] %v147
        %s149 = scalar_lea.vmem %s131, 8 [#allocation1]
        %s150 = scalar_lea.vmem %s123, 8 [#allocation0]
        %v151 = vld [vmem:[%s150] sm:$0xff]
        %152 = vst [vmem:[%s149] sm:$0xff] %v151
        %s153 = scalar_lea.vmem %s131, 16 [#allocation1]
        %s154 = scalar_lea.vmem %s123, 16 [#allocation0]
        %v155 = vld [vmem:[%s154] sm:$0xff]
        %156 = vst [vmem:[%s153] sm:$0xff] %v155
        %s157 = scalar_lea.vmem %s131, 24 [#allocation1]
        %s158 = scalar_lea.vmem %s123, 24 [#allocation0]
        %v159 = vld [vmem:[%s158] sm:$0xff]
        %160 = vst [vmem:[%s157] sm:$0xff] %v159
        %s161 = sand.u32 %s14, 7
        %s162 = scalar_lea.vmem [#allocation2], %s161
        %s163 = sand.u32 %s14, 7
        %s164 = scalar_lea.vmem [#allocation5], %s163
        %165 = vst [vmem:[%s162] sm:$0x1] 0
        %v166 = vlaneseq
        %v167 = vshrl.u32 %v166, 7
        %v168 = vmov %v167
        loop: start=0, step=1, limit=4
        $region40: #{custom-call.8} parent=38 // loop_pre_header
          _
        $region41: #{custom-call.8} parent=38 // loop_header
          %s170 = sphi 0, %s174
          %p171 = scmp.ge.s32.totalorder %s170, 4
        $region42: #{custom-call.8} parent=38 // loop_header_branch
          %173 = sbr.rel (%p171) target = $region46
        $region43: #{custom-call.8} parent=38 // loop_body
          %s175 = smul.addr %s170, 8
          %s176 = scalar_lea.vmem [#allocation7], %s175
          %s177 = smul.u32 %s170, 8
          %v178 = vstv %s177
          %v179 = vadd.s32 %v168, %v178
          %180 = vst [vmem:[%s176] sm:$0xff] %v179
        $region44: #{custom-call.8} parent=38 // loop_footer
          %s174 = sadd.s32 1, %s170
        $region45: #{custom-call.8} parent=38 // loop_footer_branch
          %169 = sbr.rel target = $region41
        $region46: #{custom-call.8} parent=38 // loop_exit
          _
        loop: start=0, step=1, limit=32
        $region47: #{custom-call.8} parent=38 // loop_pre_header
          _
        $region48: #{custom-call.8} parent=38 // loop_header
          %s182 = sphi 0, %s186
          %p183 = scmp.ge.s32.totalorder %s182, 32
        $region49: #{custom-call.8} parent=38 // loop_header_branch
          %185 = sbr.rel (%p183) target = $region53
        $region50: #{custom-call.8} parent=38 // loop_body
          %v187 = vstv %s182
          %v188 = vlaneseq
          %v189 = vshrl.u32 %v188, 7
          %v190 = vmov %v189
          %v191 = vld [vmem:[%s131] sm:$0xff]
          %v192 = vand.u32 2147483647, %v191
          %v194 = vstv %s182
          %vm195 = vcmp.ge.s32.totalorder %v190, %v194
          %vm196 = vcmp.lt.s32.totalorder %v190, 32
          %vm197 = vmand %vm195, %vm196
          %vm198 = vcmp.lt.f32.partialorder -inf, %v192
          %vm199 = vmand %vm197, %vm198
          %v200 = vsel %vm199, %v190, %v187
          %v201 = vsel %vm199, %v192, -inf
          %s202 = scalar_lea.vmem %s131, 8 [#allocation1]
          %v203 = vld [vmem:[%s202] sm:$0xff]
          %v204 = vand.u32 2147483647, %v203
          %v205 = vadd.s32 %v190, 8
          %v206 = vstv %s182
          %vm207 = vcmp.ge.s32.totalorder %v205, %v206
          %vm208 = vcmp.lt.s32.totalorder %v205, 32
          %vm209 = vmand %vm207, %vm208
          %vm210 = vcmp.lt.f32.partialorder %v201, %v204
          %vm211 = vmand %vm209, %vm210
          %v212 = vsel %vm211, %v205, %v200
          %v213 = vsel %vm211, %v204, %v201
          %s214 = scalar_lea.vmem %s131, 16 [#allocation1]
          %v215 = vld [vmem:[%s214] sm:$0xff]
          %v216 = vand.u32 2147483647, %v215
          %v217 = vadd.s32 %v190, 16
          %v218 = vstv %s182
          %vm219 = vcmp.ge.s32.totalorder %v217, %v218
          %vm220 = vcmp.lt.s32.totalorder %v217, 32
          %vm221 = vmand %vm219, %vm220
          %vm222 = vcmp.lt.f32.partialorder %v213, %v216
          %vm223 = vmand %vm221, %vm222
          %v224 = vsel %vm223, %v217, %v212
          %v225 = vsel %vm223, %v216, %v213
          %s226 = scalar_lea.vmem %s131, 24 [#allocation1]
          %v227 = vld [vmem:[%s226] sm:$0xff]
          %v228 = vand.u32 2147483647, %v227
          %v229 = vadd.s32 %v190, 24
          %v230 = vstv %s182
          %vm231 = vcmp.ge.s32.totalorder %v229, %v230
          %vm232 = vcmp.lt.s32.totalorder %v229, 32
          %vm233 = vmand %vm231, %vm232
          %vm234 = vcmp.lt.f32.partialorder %v225, %v228
          %vm235 = vmand %vm233, %vm234
          %v236 = vsel %vm235, %v229, %v224
          %v237 = vsel %vm235, %v228, %v225
          %v238 = vrot.slane %v237, 1
          %v239 = vrot.slane %v236, 1
          %vm240 = vcmp.ge.f32.partialorder %v238, %v237
          %v241 = vsel %vm240, %v238, %v237
          %v242 = vsel %vm240, %v239, %v236
          %v243 = vrot.slane %v238, 1
          %v244 = vrot.slane %v239, 1
          %vm245 = vcmp.ge.f32.partialorder %v243, %v241
          %v246 = vsel %vm245, %v243, %v241
          %v247 = vsel %vm245, %v244, %v242
          %v248 = vrot.slane %v243, 1
          %v249 = vrot.slane %v244, 1
          %vm250 = vcmp.ge.f32.partialorder %v248, %v246
          %v251 = vsel %vm250, %v248, %v246
          %v252 = vsel %vm250, %v249, %v247
          %v253 = vrot.slane %v248, 1
          %v254 = vrot.slane %v249, 1
          %vm255 = vcmp.ge.f32.partialorder %v253, %v251
          %v256 = vsel %vm255, %v253, %v251
          %v257 = vsel %vm255, %v254, %v252
          %v258 = vrot.slane %v253, 1
          %v259 = vrot.slane %v254, 1
          %vm260 = vcmp.ge.f32.partialorder %v258, %v256
          %v261 = vsel %vm260, %v258, %v256
          %v262 = vsel %vm260, %v259, %v257
          %v263 = vrot.slane %v258, 1
          %v264 = vrot.slane %v259, 1
          %vm265 = vcmp.ge.f32.partialorder %v263, %v261
          %v266 = vsel %vm265, %v263, %v261
          %v267 = vsel %vm265, %v264, %v262
          %v268 = vrot.slane %v263, 1
          %v269 = vrot.slane %v264, 1
          %vm270 = vcmp.ge.f32.partialorder %v268, %v266
          %v271 = vsel %vm270, %v268, %v266
          %v272 = vsel %vm270, %v269, %v267
          %s273 = ssub.s32 128, %s182
          %274 = vrot.lane.b32.xlu0 %v272, %s273
          %v275 = vpop.permute.xlu0 %274
          %s276 = vtos %v275
          %v277 = vstv %s182
          %v278 = vlaneseq
          %v279 = vand.u32 %v278, 127
          %vm280 = vcmp.eq.s32.totalorder %v279, %v277
          %v281 = vstv %s276
          %v282 = vld [vmem:[%s162] ss:$0 sm:$0xff]
          %v283 = vsel %vm280, %v281, %v282
          %284 = vst [vmem:[%s162] sm:$0x1] %v283
          %s285 = scalar_lea.vmem %s131, %s182 [#allocation1]
          %s286 = scalar_lea.vmem %s131, %s276 [#allocation1]
          %v287 = vld [vmem:[%s285] ss:$0 sm:$0xff]
          %v288 = vld [vmem:[%s286] ss:$0 sm:$0xff]
          %289 = vst [vmem:[%s286] sm:$0x1] %v287
          %290 = vst [vmem:[%s285] sm:$0x1] %v288
          %s291 = scalar_lea.vmem [#allocation7], %s182
          %s292 = scalar_lea.vmem [#allocation7], %s276
          %v293 = vld [vmem:[%s291] ss:$0 sm:$0xff]
          %v294 = vld [vmem:[%s292] ss:$0 sm:$0xff]
          %295 = vst [vmem:[%s292] sm:$0x1] %v293
          %296 = vst [vmem:[%s291] sm:$0x1] %v294
          %vm297 = vcmp.ne.f32.partialorder %v288, 0.0
          %vm298 = vmand %vm280, %vm297
          %v299 = vsel %vm298, %v288, 1.0
          %v300 = vlaneseq
          %v301 = vand.u32 %v300, 127
          %v302 = vstv %s182
          %vm303 = vcmp.gt.s32.totalorder %v301, %v302
          %v304 = vsel %vm303, %v288, 0.0
          %v305 = vlaneseq
          %v306 = vshrl.u32 %v305, 7
          %v307 = vmov %v306
          %v308 = vld [vmem:[%s131] sm:$0xff]
          %v310 = vstv %s182
          %vm311 = vcmp.gt.s32.totalorder %v307, %v310
          %v312 = vsel %vm311, %v299, 1.0
          %v313 = vrcp.pop %v312
          %v314 = vmul.f32 %v308, %v313
          %vm315 = vmand %vm311, %vm280
          %v316 = vsel %vm315, %v314, 0.0
          %317 = vadd.xlane.f32.xlu0 %v316
          %v318 = vpop.xlane.xlu0 %317
          %v319 = vmul.f32 %v318, %v304
          %v320 = vsub.f32 %v314, %v319
          %321 = vst [vmem:[%s131] sm:$0xff] %v320
          %s322 = scalar_lea.vmem %s131, 8 [#allocation1]
          %v323 = vld [vmem:[%s322] sm:$0xff]
          %v324 = vadd.s32 %v307, 8
          %v325 = vstv %s182
          %vm326 = vcmp.gt.s32.totalorder %v324, %v325
          %v327 = vsel %vm326, %v299, 1.0
          %v328 = vrcp.pop %v327
          %v329 = vmul.f32 %v323, %v328
          %vm330 = vmand %vm326, %vm280
          %v331 = vsel %vm330, %v329, 0.0
          %332 = vadd.xlane.f32.xlu0 %v331
          %v333 = vpop.xlane.xlu0 %332
          %v334 = vmul.f32 %v333, %v304
          %v335 = vsub.f32 %v329, %v334
          %336 = vst [vmem:[%s322] sm:$0xff] %v335
          %s337 = scalar_lea.vmem %s131, 16 [#allocation1]
          %v338 = vld [vmem:[%s337] sm:$0xff]
          %v339 = vadd.s32 %v307, 16
          %v340 = vstv %s182
          %vm341 = vcmp.gt.s32.totalorder %v339, %v340
          %v342 = vsel %vm341, %v299, 1.0
          %v343 = vrcp.pop %v342
          %v344 = vmul.f32 %v338, %v343
          %vm345 = vmand %vm341, %vm280
          %v346 = vsel %vm345, %v344, 0.0
          %347 = vadd.xlane.f32.xlu0 %v346
          %v348 = vpop.xlane.xlu0 %347
          %v349 = vmul.f32 %v348, %v304
          %v350 = vsub.f32 %v344, %v349
          %351 = vst [vmem:[%s337] sm:$0xff] %v350
          %s352 = scalar_lea.vmem %s131, 24 [#allocation1]
          %v353 = vld [vmem:[%s352] sm:$0xff]
          %v354 = vadd.s32 %v307, 24
          %v355 = vstv %s182
          %vm356 = vcmp.gt.s32.totalorder %v354, %v355
          %v357 = vsel %vm356, %v299, 1.0
          %v358 = vrcp.pop %v357
          %v359 = vmul.f32 %v353, %v358
          %vm360 = vmand %vm356, %vm280
          %v361 = vsel %vm360, %v359, 0.0
          %362 = vadd.xlane.f32.xlu0 %v361
          %v363 = vpop.xlane.xlu0 %362
          %v364 = vmul.f32 %v363, %v304
          %v365 = vsub.f32 %v359, %v364
          %366 = vst [vmem:[%s352] sm:$0xff] %v365
        $region51: #{custom-call.8} parent=38 // loop_footer
          %s186 = sadd.s32 1, %s182
        $region52: #{custom-call.8} parent=38 // loop_footer_branch
          %181 = sbr.rel target = $region48
        $region53: #{custom-call.8} parent=38 // loop_exit
          _
        %v367 = vld [vmem:[#allocation7] sm:$0xff]
        %s368 = scalar_lea.vmem [#allocation7], 8
        %v369 = vld [vmem:[%s368] sm:$0xff]
        %s370 = scalar_lea.vmem [#allocation7], 16
        %v371 = vld [vmem:[%s370] sm:$0xff]
        %s372 = scalar_lea.vmem [#allocation7], 24
        %v373 = vld [vmem:[%s372] sm:$0xff]
        %s374 = scalar_lea.vmem [#allocation7], 32
        %s375 = scalar_lea.vmem [#allocation7], 40
        %s376 = scalar_lea.vmem [#allocation7], 48
        %s377 = scalar_lea.vmem [#allocation7], 56
        %s378 = scalar_lea.vmem [#allocation7], 64
        %s379 = scalar_lea.vmem [#allocation7], 72
        %s380 = scalar_lea.vmem [#allocation7], 80
        %s381 = scalar_lea.vmem [#allocation7], 88
        %s382 = scalar_lea.vmem [#allocation7], 96
        %s383 = scalar_lea.vmem [#allocation7], 104
        %s384 = scalar_lea.vmem [#allocation7], 112
        %s385 = scalar_lea.vmem [#allocation7], 120
        %386 = vxpose.xlu0.b32.start [1/16] %v367, 128
        %387 = vxpose.xlu0.b32.cont [2/16] %v369, 128
        %388 = vxpose.xlu0.b32.cont [3/16] %v371, 128
        %389 = vxpose.xlu0.b32.cont [4/16] %v373, 128
        %390 = vxpose.xlu0.b32.cont [5/16] 0, 128
        %391 = vxpose.xlu0.b32.cont [6/16] 0, 128
        %392 = vxpose.xlu0.b32.cont [7/16] 0, 128
        %393 = vxpose.xlu0.b32.cont [8/16] 0, 128
        %394 = vxpose.xlu0.b32.cont [9/16] 0, 128
        %395 = vxpose.xlu0.b32.cont [10/16] 0, 128
        %396 = vxpose.xlu0.b32.cont [11/16] 0, 128
        %397 = vxpose.xlu0.b32.cont [12/16] 0, 128
        %398 = vxpose.xlu0.b32.cont [13/16] 0, 128
        %399 = vxpose.xlu0.b32.cont [14/16] 0, 128
        %400 = vxpose.xlu0.b32.cont [15/16] 0, 128
        %401 = vxpose.xlu0.b32.end [16/16] 0, 128
        %v402 = vpop.trf.xlu0
        %v403 = vpop.trf.xlu0
        %v404 = vpop.trf.xlu0
        %v405 = vpop.trf.xlu0
        %v406 = vpop.trf.xlu0
        %v407 = vpop.trf.xlu0
        %v408 = vpop.trf.xlu0
        %v409 = vpop.trf.xlu0
        %v410 = vpop.trf.xlu0
        %v411 = vpop.trf.xlu0
        %v412 = vpop.trf.xlu0
        %v413 = vpop.trf.xlu0
        %v414 = vpop.trf.xlu0
        %v415 = vpop.trf.xlu0
        %v416 = vpop.trf.xlu0
        %v417 = vpop.trf.xlu0
        %418 = vst [vmem:[%s164] sm:$0x1] %v402
        %s420 = sshllo.u32 0, 4
        %v422 = vld [vmem:[#allocation2] sm:%s420]
        %s423 = sshllo.u32 0, 4
        %424 = vst [vmem:[%s138] sm:%s423] %v422
        %s426 = sshllo.u32 0, 4
        %v428 = vld [vmem:[#allocation5] sm:%s426]
        %s429 = sshllo.u32 0, 4
        %430 = vst [vmem:[%s144] sm:%s429] %v428
        %s431 = sand.u32 %s14, 1
        %s432 = sand.u32 %s14, 1
        %s433 = smul.addr %s432, 32
        %s434 = scalar_lea.vmem [#allocation1], %s433
        %s435 = sand.u32 %s24, 1
        %s436 = scalar_lea.sflag [#allocation4], %s435
        %s437 = sand.u32 %s24, 1
        %s438 = smul.addr %s437, 4
        %s439 = scalar_lea.vmem [#allocation3], %s438
        %s440 = sand.u32 %s52, 1
        %s441 = sand.u32 %s52, 1
        %s442 = smul.addr %s441, 4
        %s443 = scalar_lea.vmem [#allocation6], %s442
        %s444 = smul.addr %s14, 32
        %s445 = scalar_lea.vmem %s1, %s444
        // Predicated region
        $region54: #{custom-call.8} parent=38 // pred_check
          _
        $region55: #{custom-call.8} parent=38 // pred_check_branch
          %447 = sbr.rel (0) target = $region57
        $region56: #{custom-call.8} parent=38 // pred_region
          // Predicated region
          $region58: #{custom-call.8} parent=56 // pred_check
            _
          $region59: #{custom-call.8} parent=56 // pred_check_branch
            %449 = sbr.rel (0) target = $region61
          $region60: #{custom-call.8} parent=56 // pred_region
            loop: start=0, step=1, limit=1
            $region62: #{custom-call.8} parent=60 // loop_pre_header
              _
            $region63: #{custom-call.8} parent=60 // loop_header
              %s451 = sphi 0, %s455
              %p452 = scmp.ge.s32.totalorder %s451, 1
              %s456 = sphi %s434, %s434
              %s457 = sphi %s445, %s445
            $region64: #{custom-call.8} parent=60 // loop_header_branch
              %454 = sbr.rel (%p452) target = $region68
            $region65: #{custom-call.8} parent=60 // loop_body
              %v458 = vld [vmem:[%s456] sm:$0xff]
              %459 = vst [vmem:[%s457] sm:$0xff] %v458
              %v460 = vld [vmem:[%s456 + $0x8] sm:$0xff]
              %461 = vst [vmem:[%s457 + $0x8] sm:$0xff] %v460
              %v462 = vld [vmem:[%s456 + $0x10] sm:$0xff]
              %463 = vst [vmem:[%s457 + $0x10] sm:$0xff] %v462
              %v464 = vld [vmem:[%s456 + $0x18] sm:$0xff]
              %465 = vst [vmem:[%s457 + $0x18] sm:$0xff] %v464
            $region66: #{custom-call.8} parent=60 // loop_footer
              %s455 = sadd.s32 1, %s451
            $region67: #{custom-call.8} parent=60 // loop_footer_branch
              %450 = sbr.rel target = $region63
            $region68: #{custom-call.8} parent=60 // loop_exit
              _
          $region61: #{custom-call.8} parent=56 // pred_fallthru
            _
          // Predicated region
          $region69: #{custom-call.8} parent=56 // pred_check
            _
          $region70: #{custom-call.8} parent=56 // pred_check_branch
            %467 = sbr.rel target = $region72
          $region71: #{custom-call.8} parent=56 // pred_region
            _
          $region72: #{custom-call.8} parent=56 // pred_fallthru
            _
        $region57: #{custom-call.8} parent=38 // pred_fallthru
          _
        %468 = vnop
        // Predicated region
        $region73: #{custom-call.8} parent=38 // pred_check
          %p469 = pneg %p34
        $region74: #{custom-call.8} parent=38 // pred_check_branch
          %471 = sbr.rel (%p469) target = $region76
        $region75: #{custom-call.8} parent=38 // pred_region
          %s472 = sshrl.u32 %s14, 3
          %s474 = ssub.s32 64, 64
          %475 = vsyncadd %s436, %s474
          %s476 = smul.addr %s472, 64
          %s477 = scalar_lea.hbm %s2, %s476
          %s479 = sshll.u32 %s439, 4
          %s480 = int_to_ptr.vmem [resolvable:$true] %s479
          %482 = dma.vmem_to_hbm [thread:$0]  %s480, 64, %s477, %s436
        $region76: #{custom-call.8} parent=38 // pred_fallthru
          _
        // Predicated region
        $region77: #{custom-call.8} parent=38 // pred_check
          %p483 = pneg %p62
        $region78: #{custom-call.8} parent=38 // pred_check_branch
          %485 = sbr.rel (%p483) target = $region80
        $region79: #{custom-call.8} parent=38 // pred_region
          %s486 = sshrl.u32 %s14, 3
          %s487 = smul.addr %s486, 4
          %s488 = scalar_lea.vmem %s3, %s487
          // Predicated region
          $region81: #{custom-call.8} parent=79 // pred_check
            _
          $region82: #{custom-call.8} parent=79 // pred_check_branch
            %490 = sbr.rel (0) target = $region84
          $region83: #{custom-call.8} parent=79 // pred_region
            // Predicated region
            $region85: #{custom-call.8} parent=83 // pred_check
              _
            $region86: #{custom-call.8} parent=83 // pred_check_branch
              %492 = sbr.rel target = $region88
            $region87: #{custom-call.8} parent=83 // pred_region
              // Predicated region
              $region100: #{custom-call.8} parent=87 // pred_check
                _
              $region101: #{custom-call.8} parent=87 // pred_check_branch
                %507 = sbr.rel (0) target = $region103
              $region102: #{custom-call.8} parent=87 // pred_region
                loop: start=0, step=1, limit=1
                $region104: #{custom-call.8} parent=102 // loop_pre_header
                  _
                $region105: #{custom-call.8} parent=102 // loop_header
                  %s510 = sphi 0, %s514
                  %p511 = scmp.ge.s32.totalorder %s510, 1
                  %s515 = sphi %s443, %s443
                  %s516 = sphi %s488, %s488
                $region106: #{custom-call.8} parent=102 // loop_header_branch
                  %513 = sbr.rel (%p511) target = $region110
                $region107: #{custom-call.8} parent=102 // loop_body
                  %v517 = vld [vmem:[%s515] sm:$0xf]
                  %518 = vst [vmem:[%s516] sm:$0xf] %v517
                $region108: #{custom-call.8} parent=102 // loop_footer
                  %s514 = sadd.s32 1, %s510
                $region109: #{custom-call.8} parent=102 // loop_footer_branch
                  %509 = sbr.rel target = $region105
                $region110: #{custom-call.8} parent=102 // loop_exit
                  _
              $region103: #{custom-call.8} parent=87 // pred_fallthru
                _
            $region88: #{custom-call.8} parent=83 // pred_fallthru
              _
            // Predicated region
            $region89: #{custom-call.8} parent=83 // pred_check
              _
            $region90: #{custom-call.8} parent=83 // pred_check_branch
              %494 = sbr.rel (0) target = $region92
            $region91: #{custom-call.8} parent=83 // pred_region
              loop: start=0, step=1, limit=1
              $region93: #{custom-call.8} parent=91 // loop_pre_header
                _
              $region94: #{custom-call.8} parent=91 // loop_header
                %s497 = sphi 0, %s501
                %p498 = scmp.ge.s32.totalorder %s497, 1
                %s502 = sphi %s443, %s443
                %s503 = sphi %s488, %s488
              $region95: #{custom-call.8} parent=91 // loop_header_branch
                %500 = sbr.rel (%p498) target = $region99
              $region96: #{custom-call.8} parent=91 // loop_body
                %v504 = vld [vmem:[%s502] sm:$0xf]
                %505 = vst [vmem:[%s503] sm:$0xf] %v504
              $region97: #{custom-call.8} parent=91 // loop_footer
                %s501 = sadd.s32 1, %s497
              $region98: #{custom-call.8} parent=91 // loop_footer_branch
                %496 = sbr.rel target = $region94
              $region99: #{custom-call.8} parent=91 // loop_exit
                _
            $region92: #{custom-call.8} parent=83 // pred_fallthru
              _
          $region84: #{custom-call.8} parent=79 // pred_fallthru
            _
          %519 = vnop
        $region80: #{custom-call.8} parent=38 // pred_fallthru
          _
      $region39: #{custom-call.8} parent=5 // pred_fallthru
        _
      %p520 = scmp.le.s32.totalorder 2, %s9
      // Predicated region
      $region111: #{custom-call.8} parent=5 // pred_check
        %p521 = pneg %p520
      $region112: #{custom-call.8} parent=5 // pred_check_branch
        %523 = sbr.rel (%p521) target = $region114
      $region113: #{custom-call.8} parent=5 // pred_region
        %s524 = ssub.s32 %s9, 2
        %s525 = sand.u32 %s15, 1
        %s526 = sand.u32 %s15, 1
        %s527 = smul.addr %s526, 32
        %s528 = scalar_lea.vmem [#allocation1], %s527
        // Predicated region
        $region115: #{custom-call.8} parent=113 // pred_check
          %p529 = pneg %p40
        $region116: #{custom-call.8} parent=113 // pred_check_branch
          %531 = sbr.rel (%p529) target = $region118
        $region117: #{custom-call.8} parent=113 // pred_region
          %s532 = sand.u32 %s25, 1
          %s533 = scalar_lea.sflag [#allocation4], %s532
          %s534 = sand.u32 %s25, 1
          %s535 = smul.addr %s534, 4
          %s536 = scalar_lea.vmem [#allocation3], %s535
          %537 = dma.done %s533, 64
        $region118: #{custom-call.8} parent=113 // pred_fallthru
          _
        // Predicated region
        $region119: #{custom-call.8} parent=113 // pred_check
          %p538 = pneg %p68
        $region120: #{custom-call.8} parent=113 // pred_check_branch
          %540 = sbr.rel (%p538) target = $region122
        $region121: #{custom-call.8} parent=113 // pred_region
          %s541 = sand.u32 %s53, 1
          %s542 = sand.u32 %s53, 1
          %s543 = smul.addr %s542, 4
          %s544 = scalar_lea.vmem [#allocation6], %s543
        $region122: #{custom-call.8} parent=113 // pred_fallthru
          _
      $region114: #{custom-call.8} parent=5 // pred_fallthru
        _
    $region6: #{custom-call.8} parent=1 // loop_footer
      %s13 = sadd.s32 1, %s9
    $region7: #{custom-call.8} parent=1 // loop_footer_branch
      %8 = sbr.rel target = $region3
    $region8: #{custom-call.8} parent=1 // loop_exit
      _
    %545 = vsyncpa [#allocation4], 1
    %s546 = scalar_lea.sflag [#allocation4], 1
    %547 = vsyncpa %s546, 1

// kernel: fixed_point_layer_forward.2
$region0: #{fixed_point_layer_forward.2}
  #allocation0 [shape = 'u32[]', space=smem, size = 0x4, offset = 0x4, fixed_abs, tag = 'smem constant byte address 0x4 - core index']
  #allocation1 [shape = 'u32[144,128]{1,0:T(1,128)}', space=vmem, size = 0x12000, scoped, tag = 'internal scratch']
  %s0 = inlined_call_operand.vmem [shape: f32[4,32], index: 0, kind: input, shape index: {}]
  %s1 = inlined_call_operand.vmem [shape: f32[32,32], index: 1, kind: input, shape index: {}]
  %s2 = inlined_call_operand.vmem [shape: f32[32,1024], index: 2, kind: input, shape index: {}]
  %s3 = inlined_call_operand.vmem [shape: f32[1,1024], index: 3, kind: input, shape index: {}]
  %s4 = inlined_call_operand.vmem [shape: f32[4,32], index: 4, kind: output, shape index: {0}]
  %s5 = inlined_call_operand.vmem [shape: f32[4,32], index: 5, kind: output, shape index: {1}]
  %s6 = inlined_call_operand.vmem [shape: f32[4,1024], index: 6, kind: output, shape index: {2}]
  %7 = xla_tuple %s4, %s5, %s6
  %s8 = sld [smem:[#allocation0]]
  $region42: #{fixed_point_layer_forward.2} parent=0
    _
  %s10 = ssub.s32 1, %s8
  %s11 = scalar_select 0, %s10, %s8
  // Predicated region
  $region2: #{fixed_point_layer_forward.2} parent=0 // pred_check
    _
  $region3: #{fixed_point_layer_forward.2} parent=0 // pred_check_branch
    %13 = sbr.rel (0) target = $region5
  $region4: #{fixed_point_layer_forward.2} parent=0 // pred_region
    _
  $region5: #{fixed_point_layer_forward.2} parent=0 // pred_fallthru
    _
  // Predicated region
  $region6: #{fixed_point_layer_forward.2} parent=0 // pred_check
    _
  $region7: #{fixed_point_layer_forward.2} parent=0 // pred_check_branch
    %15 = sbr.rel (0) target = $region9
  $region8: #{fixed_point_layer_forward.2} parent=0 // pred_region
    _
  $region9: #{fixed_point_layer_forward.2} parent=0 // pred_fallthru
    _
  // Predicated region
  $region10: #{fixed_point_layer_forward.2} parent=0 // pred_check
    _
  $region11: #{fixed_point_layer_forward.2} parent=0 // pred_check_branch
    %17 = sbr.rel (0) target = $region13
  $region12: #{fixed_point_layer_forward.2} parent=0 // pred_region
    _
  $region13: #{fixed_point_layer_forward.2} parent=0 // pred_fallthru
    _
  // Predicated region
  $region14: #{fixed_point_layer_forward.2} parent=0 // pred_check
    _
  $region15: #{fixed_point_layer_forward.2} parent=0 // pred_check_branch
    %19 = sbr.rel (0) target = $region17
  $region16: #{fixed_point_layer_forward.2} parent=0 // pred_region
    _
  $region17: #{fixed_point_layer_forward.2} parent=0 // pred_fallthru
    _
  %v20 = vld [vmem:[%s0] sm:$0xf]
  %v21 = vtanh.pop %v20
  %v22 = vld [vmem:[%s1] sm:$0xff]
  %v23 = vld [vmem:[%s1 + $0x8] sm:$0xff]
  %v24 = vld [vmem:[%s1 + $0x10] sm:$0xff]
  %v25 = vld [vmem:[%s1 + $0x18] sm:$0xff]
  %v26 = vld [vmem:[%s2] sm:$0xff]
  %v27 = vld [vmem:[%s2 + $0x8] sm:$0xff]
  %v28 = vld [vmem:[%s2 + $0x10] sm:$0xff]
  %v29 = vld [vmem:[%s2 + $0x18] sm:$0xff]
  %v30 = vld [vmem:[%s2 + $0x20] sm:$0xff]
  %v31 = vld [vmem:[%s2 + $0x28] sm:$0xff]
  %v32 = vld [vmem:[%s2 + $0x30] sm:$0xff]
  %v33 = vld [vmem:[%s2 + $0x38] sm:$0xff]
  %v34 = vld [vmem:[%s2 + $0x40] sm:$0xff]
  %v35 = vld [vmem:[%s2 + $0x48] sm:$0xff]
  %v36 = vld [vmem:[%s2 + $0x50] sm:$0xff]
  %v37 = vld [vmem:[%s2 + $0x58] sm:$0xff]
  %v38 = vld [vmem:[%s2 + $0x60] sm:$0xff]
  %v39 = vld [vmem:[%s2 + $0x68] sm:$0xff]
  %v40 = vld [vmem:[%s2 + $0x70] sm:$0xff]
  %v41 = vld [vmem:[%s2 + $0x78] sm:$0xff]
  %v42 = vld [vmem:[%s2 + $0x80] sm:$0xff]
  %v43 = vld [vmem:[%s2 + $0x88] sm:$0xff]
  %v44 = vld [vmem:[%s2 + $0x90] sm:$0xff]
  %v45 = vld [vmem:[%s2 + $0x98] sm:$0xff]
  %v46 = vld [vmem:[%s2 + $0xa0] sm:$0xff]
  %v47 = vld [vmem:[%s2 + $0xa8] sm:$0xff]
  %v48 = vld [vmem:[%s2 + $0xb0] sm:$0xff]
  %v49 = vld [vmem:[%s2 + $0xb8] sm:$0xff]
  %v50 = vld [vmem:[%s2 + $0xc0] sm:$0xff]
  %v51 = vld [vmem:[%s2 + $0xc8] sm:$0xff]
  %v52 = vld [vmem:[%s2 + $0xd0] sm:$0xff]
  %v53 = vld [vmem:[%s2 + $0xd8] sm:$0xff]
  %v54 = vld [vmem:[%s2 + $0xe0] sm:$0xff]
  %v55 = vld [vmem:[%s2 + $0xe8] sm:$0xff]
  %v56 = vld [vmem:[%s2 + $0xf0] sm:$0xff]
  %v57 = vld [vmem:[%s2 + $0xf8] sm:$0xff]
  %v58 = vld [vmem:[%s3] sm:$0xff]
  %vm59 = vcmask 261120
  %v61 = vsel %vm59, %v21, 0
  %v64 = vsel %vm59, %v22, 0
  %v67 = vsel %vm59, %v23, 0
  %v70 = vsel %vm59, %v24, 0
  %v73 = vsel %vm59, %v25, 0
  %75 = vmatprep.subr.mxu0 0.0
  %76 = vmatpush1.xpose.msra.mxu0 %v64
  %77 = vmatprep.subr.mxu0 0.0
  %78 = vmatpush1.xpose.msra.mxu0 %v67
  %79 = vmatprep.subr.mxu0 0.0
  %80 = vmatpush1.xpose.msra.mxu0 %v70
  %81 = vmatprep.subr.mxu0 0.0
  %82 = vmatpush1.xpose.msra.mxu0 %v73
  %83 = vmatprep.subr.mxu0 0.0
  %84 = vmatpush1.xpose.msra.mxu0 0.0
  %85 = vmatprep.subr.mxu0 0.0
  %86 = vmatpush1.xpose.msra.mxu0 0.0
  %87 = vmatprep.subr.mxu0 0.0
  %88 = vmatpush1.xpose.msra.mxu0 0.0
  %89 = vmatprep.subr.mxu0 0.0
  %90 = vmatpush1.xpose.msra.mxu0 0.0
  %91 = vmatprep.subr.mxu0 0.0
  %92 = vmatpush1.xpose.msra.mxu0 0.0
  %93 = vmatprep.subr.mxu0 0.0
  %94 = vmatpush1.xpose.msra.mxu0 0.0
  %95 = vmatprep.subr.mxu0 0.0
  %96 = vmatpush1.xpose.msra.mxu0 0.0
  %97 = vmatprep.subr.mxu0 0.0
  %98 = vmatpush1.xpose.msra.mxu0 0.0
  %99 = vmatprep.subr.mxu0 0.0
  %100 = vmatpush1.xpose.msra.mxu0 0.0
  %101 = vmatprep.subr.mxu0 0.0
  %102 = vmatpush1.xpose.msra.mxu0 0.0
  %103 = vmatprep.subr.mxu0 0.0
  %104 = vmatpush1.xpose.msra.mxu0 0.0
  %105 = vmatprep.subr.mxu0 0.0
  %106 = vmatpush1.xpose.msra.mxu0 0.0
  %107 = vmatprep.subr.mxu0 0.0
  %108 = vmatpush1.xpose.msra.mxu0 0.0
  %109 = vmatprep.subr.mxu0 0.0
  %110 = vmatpush1.xpose.msra.mxu0 0.0
  %111 = vmatprep.subr.mxu0 0.0
  %112 = vmatpush1.xpose.msra.mxu0 0.0
  %113 = vmatprep.subr.mxu0 0.0
  %114 = vmatpush1.xpose.msra.mxu0 0.0
  %115 = vmatprep.subr.mxu0 0.0
  %116 = vmatpush1.xpose.msra.mxu0 0.0
  %117 = vmatprep.subr.mxu0 0.0
  %118 = vmatpush1.xpose.msra.mxu0 0.0
  %119 = vmatprep.subr.mxu0 0.0
  %120 = vmatpush1.xpose.msra.mxu0 0.0
  %121 = vmatprep.subr.mxu0 0.0
  %122 = vmatpush1.xpose.msra.mxu0 0.0
  %123 = vmatprep.subr.mxu0 0.0
  %124 = vmatpush1.xpose.msra.mxu0 0.0
  %125 = vmatprep.subr.mxu0 0.0
  %126 = vmatpush1.xpose.msra.mxu0 0.0
  %127 = vmatprep.subr.mxu0 0.0
  %128 = vmatpush1.xpose.msra.mxu0 0.0
  %129 = vmatprep.subr.mxu0 0.0
  %130 = vmatpush1.xpose.msra.mxu0 0.0
  %131 = vmatprep.subr.mxu0 0.0
  %132 = vmatpush1.xpose.msra.mxu0 0.0
  %133 = vmatprep.subr.mxu0 0.0
  %134 = vmatpush1.xpose.msra.mxu0 0.0
  %135 = vmatprep.subr.mxu0 0.0
  %136 = vmatpush1.xpose.msra.mxu0 0.0
  %137 = vmatprep.subr.mxu0 0.0
  %138 = vmatpush1.xpose.msra.mxu0 0.0
  %139 = vmatprep.mubr.f32.mxu0 0.0
  %140 = vmatmul.mubr.f32.gmra.mrb[0].mxu0 %v61
  %v141 = vpop.f32.mrb[0].mxu0
  %v142 = vadd.f32 %v20, %v141
  %v143 = vpop.f32.mrb[0].mxu0
  %144 = vdwg.mxu0
  %v145 = vtanh.pop %v142
  %v146 = vsub.f32 %v21, %v145
  %v147 = vmul.f32 %v145, %v145
  %v148 = vsub.f32 1.0, %v147
  %v150 = vsel %vm59, %v148, 0
  %152 = vmatprep.subr.mxu0 %v27
  %153 = vmatpush1.msra.mxu0 %v26
  %154 = vmatprep.subr.mxu0 %v35
  %155 = vmatpush1.msra.mxu0 %v34
  %156 = vmatprep.subr.mxu0 %v43
  %157 = vmatpush1.msra.mxu0 %v42
  %158 = vmatprep.subr.mxu0 %v51
  %159 = vmatpush1.msra.mxu0 %v50
  %160 = vmatprep.subr.mxu0 0.0
  %161 = vmatpush1.msra.mxu0 0.0
  %162 = vmatprep.subr.mxu0 0.0
  %163 = vmatpush1.msra.mxu0 0.0
  %164 = vmatprep.subr.mxu0 0.0
  %165 = vmatpush1.msra.mxu0 0.0
  %166 = vmatprep.subr.mxu0 0.0
  %167 = vmatpush1.msra.mxu0 0.0
  %168 = vmatprep.subr.mxu0 0.0
  %169 = vmatpush1.msra.mxu0 0.0
  %170 = vmatprep.subr.mxu0 0.0
  %171 = vmatpush1.msra.mxu0 0.0
  %172 = vmatprep.subr.mxu0 0.0
  %173 = vmatpush1.msra.mxu0 0.0
  %174 = vmatprep.subr.mxu0 0.0
  %175 = vmatpush1.msra.mxu0 0.0
  %176 = vmatprep.subr.mxu0 0.0
  %177 = vmatpush1.msra.mxu0 0.0
  %178 = vmatprep.subr.mxu0 0.0
  %179 = vmatpush1.msra.mxu0 0.0
  %180 = vmatprep.subr.mxu0 0.0
  %181 = vmatpush1.msra.mxu0 0.0
  %182 = vmatprep.subr.mxu0 0.0
  %183 = vmatpush1.msra.mxu0 0.0
  %184 = vmatprep.subr.mxu0 0.0
  %185 = vmatpush1.msra.mxu0 0.0
  %186 = vmatprep.subr.mxu0 0.0
  %187 = vmatpush1.msra.mxu0 0.0
  %188 = vmatprep.subr.mxu0 0.0
  %189 = vmatpush1.msra.mxu0 0.0
  %190 = vmatprep.subr.mxu0 0.0
  %191 = vmatpush1.msra.mxu0 0.0
  %192 = vmatprep.subr.mxu0 0.0
  %193 = vmatpush1.msra.mxu0 0.0
  %194 = vmatprep.subr.mxu0 0.0
  %195 = vmatpush1.msra.mxu0 0.0
  %196 = vmatprep.subr.mxu0 0.0
  %197 = vmatpush1.msra.mxu0 0.0
  %198 = vmatprep.subr.mxu0 0.0
  %199 = vmatpush1.msra.mxu0 0.0
  %200 = vmatprep.subr.mxu0 0.0
  %201 = vmatpush1.msra.mxu0 0.0
  %202 = vmatprep.subr.mxu0 0.0
  %203 = vmatpush1.msra.mxu0 0.0
  %204 = vmatprep.subr.mxu0 0.0
  %205 = vmatpush1.msra.mxu0 0.0
  %206 = vmatprep.subr.mxu0 0.0
  %207 = vmatpush1.msra.mxu0 0.0
  %208 = vmatprep.subr.mxu0 0.0
  %209 = vmatpush1.msra.mxu0 0.0
  %210 = vmatprep.subr.mxu0 0.0
  %211 = vmatpush1.msra.mxu0 0.0
  %212 = vmatprep.subr.mxu0 0.0
  %213 = vmatpush1.msra.mxu0 0.0
  %214 = vmatprep.subr.mxu0 0.0
  %215 = vmatpush1.msra.mxu0 0.0
  %216 = vmatprep.mubr.f32.mxu0 0.0
  %217 = vmatmul.mubr.f32.gmra.mrb[0].mxu0 %v150
  %v218 = vpop.f32.mrb[0].mxu0
  %v219 = vadd.f32 0.0, %v218
  %v220 = vpop.f32.mrb[0].mxu0
  %v221 = vadd.f32 0.0, %v220
  %222 = vdwg.mxu0
  %223 = vmatprep.subr.mxu0 %v29
  %224 = vmatpush1.msra.mxu0 %v28
  %225 = vmatprep.subr.mxu0 %v37
  %226 = vmatpush1.msra.mxu0 %v36
  %227 = vmatprep.subr.mxu0 %v45
  %228 = vmatpush1.msra.mxu0 %v44
  %229 = vmatprep.subr.mxu0 %v53
  %230 = vmatpush1.msra.mxu0 %v52
  %231 = vmatprep.subr.mxu0 0.0
  %232 = vmatpush1.msra.mxu0 0.0
  %233 = vmatprep.subr.mxu0 0.0
  %234 = vmatpush1.msra.mxu0 0.0
  %235 = vmatprep.subr.mxu0 0.0
  %236 = vmatpush1.msra.mxu0 0.0
  %237 = vmatprep.subr.mxu0 0.0
  %238 = vmatpush1.msra.mxu0 0.0
  %239 = vmatprep.subr.mxu0 0.0
  %240 = vmatpush1.msra.mxu0 0.0
  %241 = vmatprep.subr.mxu0 0.0
  %242 = vmatpush1.msra.mxu0 0.0
  %243 = vmatprep.subr.mxu0 0.0
  %244 = vmatpush1.msra.mxu0 0.0
  %245 = vmatprep.subr.mxu0 0.0
  %246 = vmatpush1.msra.mxu0 0.0
  %247 = vmatprep.subr.mxu0 0.0
  %248 = vmatpush1.msra.mxu0 0.0
  %249 = vmatprep.subr.mxu0 0.0
  %250 = vmatpush1.msra.mxu0 0.0
  %251 = vmatprep.subr.mxu0 0.0
  %252 = vmatpush1.msra.mxu0 0.0
  %253 = vmatprep.subr.mxu0 0.0
  %254 = vmatpush1.msra.mxu0 0.0
  %255 = vmatprep.subr.mxu0 0.0
  %256 = vmatpush1.msra.mxu0 0.0
  %257 = vmatprep.subr.mxu0 0.0
  %258 = vmatpush1.msra.mxu0 0.0
  %259 = vmatprep.subr.mxu0 0.0
  %260 = vmatpush1.msra.mxu0 0.0
  %261 = vmatprep.subr.mxu0 0.0
  %262 = vmatpush1.msra.mxu0 0.0
  %263 = vmatprep.subr.mxu0 0.0
  %264 = vmatpush1.msra.mxu0 0.0
  %265 = vmatprep.subr.mxu0 0.0
  %266 = vmatpush1.msra.mxu0 0.0
  %267 = vmatprep.subr.mxu0 0.0
  %268 = vmatpush1.msra.mxu0 0.0
  %269 = vmatprep.subr.mxu0 0.0
  %270 = vmatpush1.msra.mxu0 0.0
  %271 = vmatprep.subr.mxu0 0.0
  %272 = vmatpush1.msra.mxu0 0.0
  %273 = vmatprep.subr.mxu0 0.0
  %274 = vmatpush1.msra.mxu0 0.0
  %275 = vmatprep.subr.mxu0 0.0
  %276 = vmatpush1.msra.mxu0 0.0
  %277 = vmatprep.subr.mxu0 0.0
  %278 = vmatpush1.msra.mxu0 0.0
  %279 = vmatprep.subr.mxu0 0.0
  %280 = vmatpush1.msra.mxu0 0.0
  %281 = vmatprep.subr.mxu0 0.0
  %282 = vmatpush1.msra.mxu0 0.0
  %283 = vmatprep.subr.mxu0 0.0
  %284 = vmatpush1.msra.mxu0 0.0
  %285 = vmatprep.subr.mxu0 0.0
  %286 = vmatpush1.msra.mxu0 0.0
  %287 = vmatprep.mubr.f32.mxu0 0.0
  %288 = vmatmul.mubr.f32.gmra.mrb[0].mxu0 %v150
  %v289 = vpop.f32.mrb[0].mxu0
  %v290 = vadd.f32 0.0, %v289
  %v291 = vpop.f32.mrb[0].mxu0
  %v292 = vadd.f32 0.0, %v291
  %293 = vdwg.mxu0
  %294 = vmatprep.subr.mxu0 %v31
  %295 = vmatpush1.msra.mxu0 %v30
  %296 = vmatprep.subr.mxu0 %v39
  %297 = vmatpush1.msra.mxu0 %v38
  %298 = vmatprep.subr.mxu0 %v47
  %299 = vmatpush1.msra.mxu0 %v46
  %300 = vmatprep.subr.mxu0 %v55
  %301 = vmatpush1.msra.mxu0 %v54
  %302 = vmatprep.subr.mxu0 0.0
  %303 = vmatpush1.msra.mxu0 0.0
  %304 = vmatprep.subr.mxu0 0.0
  %305 = vmatpush1.msra.mxu0 0.0
  %306 = vmatprep.subr.mxu0 0.0
  %307 = vmatpush1.msra.mxu0 0.0
  %308 = vmatprep.subr.mxu0 0.0
  %309 = vmatpush1.msra.mxu0 0.0
  %310 = vmatprep.subr.mxu0 0.0
  %311 = vmatpush1.msra.mxu0 0.0
  %312 = vmatprep.subr.mxu0 0.0
  %313 = vmatpush1.msra.mxu0 0.0
  %314 = vmatprep.subr.mxu0 0.0
  %315 = vmatpush1.msra.mxu0 0.0
  %316 = vmatprep.subr.mxu0 0.0
  %317 = vmatpush1.msra.mxu0 0.0
  %318 = vmatprep.subr.mxu0 0.0
  %319 = vmatpush1.msra.mxu0 0.0
  %320 = vmatprep.subr.mxu0 0.0
  %321 = vmatpush1.msra.mxu0 0.0
  %322 = vmatprep.subr.mxu0 0.0
  %323 = vmatpush1.msra.mxu0 0.0
  %324 = vmatprep.subr.mxu0 0.0
  %325 = vmatpush1.msra.mxu0 0.0
  %326 = vmatprep.subr.mxu0 0.0
  %327 = vmatpush1.msra.mxu0 0.0
  %328 = vmatprep.subr.mxu0 0.0
  %329 = vmatpush1.msra.mxu0 0.0
  %330 = vmatprep.subr.mxu0 0.0
  %331 = vmatpush1.msra.mxu0 0.0
  %332 = vmatprep.subr.mxu0 0.0
  %333 = vmatpush1.msra.mxu0 0.0
  %334 = vmatprep.subr.mxu0 0.0
  %335 = vmatpush1.msra.mxu0 0.0
  %336 = vmatprep.subr.mxu0 0.0
  %337 = vmatpush1.msra.mxu0 0.0
  %338 = vmatprep.subr.mxu0 0.0
  %339 = vmatpush1.msra.mxu0 0.0
  %340 = vmatprep.subr.mxu0 0.0
  %341 = vmatpush1.msra.mxu0 0.0
  %342 = vmatprep.subr.mxu0 0.0
  %343 = vmatpush1.msra.mxu0 0.0
  %344 = vmatprep.subr.mxu0 0.0
  %345 = vmatpush1.msra.mxu0 0.0
  %346 = vmatprep.subr.mxu0 0.0
  %347 = vmatpush1.msra.mxu0 0.0
  %348 = vmatprep.subr.mxu0 0.0
  %349 = vmatpush1.msra.mxu0 0.0
  %350 = vmatprep.subr.mxu0 0.0
  %351 = vmatpush1.msra.mxu0 0.0
  %352 = vmatprep.subr.mxu0 0.0
  %353 = vmatpush1.msra.mxu0 0.0
  %354 = vmatprep.subr.mxu0 0.0
  %355 = vmatpush1.msra.mxu0 0.0
  %356 = vmatprep.subr.mxu0 0.0
  %357 = vmatpush1.msra.mxu0 0.0
  %358 = vmatprep.mubr.f32.mxu0 0.0
  %359 = vmatmul.mubr.f32.gmra.mrb[0].mxu0 %v150
  %v360 = vpop.f32.mrb[0].mxu0
  %v361 = vadd.f32 0.0, %v360
  %v362 = vpop.f32.mrb[0].mxu0
  %v363 = vadd.f32 0.0, %v362
  %364 = vdwg.mxu0
  %365 = vmatprep.subr.mxu0 %v33
  %366 = vmatpush1.msra.mxu0 %v32
  %367 = vmatprep.subr.mxu0 %v41
  %368 = vmatpush1.msra.mxu0 %v40
  %369 = vmatprep.subr.mxu0 %v49
  %370 = vmatpush1.msra.mxu0 %v48
  %371 = vmatprep.subr.mxu0 %v57
  %372 = vmatpush1.msra.mxu0 %v56
  %373 = vmatprep.subr.mxu0 0.0
  %374 = vmatpush1.msra.mxu0 0.0
  %375 = vmatprep.subr.mxu0 0.0
  %376 = vmatpush1.msra.mxu0 0.0
  %377 = vmatprep.subr.mxu0 0.0
  %378 = vmatpush1.msra.mxu0 0.0
  %379 = vmatprep.subr.mxu0 0.0
  %380 = vmatpush1.msra.mxu0 0.0
  %381 = vmatprep.subr.mxu0 0.0
  %382 = vmatpush1.msra.mxu0 0.0
  %383 = vmatprep.subr.mxu0 0.0
  %384 = vmatpush1.msra.mxu0 0.0
  %385 = vmatprep.subr.mxu0 0.0
  %386 = vmatpush1.msra.mxu0 0.0
  %387 = vmatprep.subr.mxu0 0.0
  %388 = vmatpush1.msra.mxu0 0.0
  %389 = vmatprep.subr.mxu0 0.0
  %390 = vmatpush1.msra.mxu0 0.0
  %391 = vmatprep.subr.mxu0 0.0
  %392 = vmatpush1.msra.mxu0 0.0
  %393 = vmatprep.subr.mxu0 0.0
  %394 = vmatpush1.msra.mxu0 0.0
  %395 = vmatprep.subr.mxu0 0.0
  %396 = vmatpush1.msra.mxu0 0.0
  %397 = vmatprep.subr.mxu0 0.0
  %398 = vmatpush1.msra.mxu0 0.0
  %399 = vmatprep.subr.mxu0 0.0
  %400 = vmatpush1.msra.mxu0 0.0
  %401 = vmatprep.subr.mxu0 0.0
  %402 = vmatpush1.msra.mxu0 0.0
  %403 = vmatprep.subr.mxu0 0.0
  %404 = vmatpush1.msra.mxu0 0.0
  %405 = vmatprep.subr.mxu0 0.0
  %406 = vmatpush1.msra.mxu0 0.0
  %407 = vmatprep.subr.mxu0 0.0
  %408 = vmatpush1.msra.mxu0 0.0
  %409 = vmatprep.subr.mxu0 0.0
  %410 = vmatpush1.msra.mxu0 0.0
  %411 = vmatprep.subr.mxu0 0.0
  %412 = vmatpush1.msra.mxu0 0.0
  %413 = vmatprep.subr.mxu0 0.0
  %414 = vmatpush1.msra.mxu0 0.0
  %415 = vmatprep.subr.mxu0 0.0
  %416 = vmatpush1.msra.mxu0 0.0
  %417 = vmatprep.subr.mxu0 0.0
  %418 = vmatpush1.msra.mxu0 0.0
  %419 = vmatprep.subr.mxu0 0.0
  %420 = vmatpush1.msra.mxu0 0.0
  %421 = vmatprep.subr.mxu0 0.0
  %422 = vmatpush1.msra.mxu0 0.0
  %423 = vmatprep.subr.mxu0 0.0
  %424 = vmatpush1.msra.mxu0 0.0
  %425 = vmatprep.subr.mxu0 0.0
  %426 = vmatpush1.msra.mxu0 0.0
  %427 = vmatprep.subr.mxu0 0.0
  %428 = vmatpush1.msra.mxu0 0.0
  %429 = vmatprep.mubr.f32.mxu0 0.0
  %430 = vmatmul.mubr.f32.gmra.mrb[0].mxu0 %v150
  %v431 = vpop.f32.mrb[0].mxu0
  %v432 = vadd.f32 0.0, %v431
  %v433 = vpop.f32.mrb[0].mxu0
  %v434 = vadd.f32 0.0, %v433
  %435 = vdwg.mxu0
  %v437 = vlaneseq
  %v438 = vshrl.u32 %v437, 7
  %v439 = vsub.s32 0, %v438
  %v440 = vrot.slane %v58, %v439
  %v441 = vlaneseq
  %v442 = vshrl.u32 %v441, 7
  %v443 = vsub.s32 1, %v442
  %v444 = vrot.slane %v58, %v443
  %v445 = vlaneseq
  %v446 = vshrl.u32 %v445, 7
  %v447 = vsub.s32 2, %v446
  %v448 = vrot.slane %v58, %v447
  %v449 = vlaneseq
  %v450 = vshrl.u32 %v449, 7
  %v451 = vsub.s32 3, %v450
  %v452 = vrot.slane %v58, %v451
  %v453 = vlaneseq
  %v454 = vshrl.u32 %v453, 7
  %v455 = vsub.s32 4, %v454
  %v456 = vrot.slane %v58, %v455
  %v457 = vlaneseq
  %v458 = vshrl.u32 %v457, 7
  %v459 = vsub.s32 5, %v458
  %v460 = vrot.slane %v58, %v459
  %v461 = vlaneseq
  %v462 = vshrl.u32 %v461, 7
  %v463 = vsub.s32 6, %v462
  %v464 = vrot.slane %v58, %v463
  %v465 = vlaneseq
  %v466 = vshrl.u32 %v465, 7
  %v467 = vsub.s32 7, %v466
  %v468 = vrot.slane %v58, %v467
  %v477 = vsub.f32 %v440, %v219
  %v478 = vsub.f32 %v444, %v221
  %v479 = vsub.f32 %v448, %v290
  %v480 = vsub.f32 %v452, %v292
  %v481 = vsub.f32 %v456, %v361
  %v482 = vsub.f32 %v460, %v363
  %v483 = vsub.f32 %v464, %v432
  %v484 = vsub.f32 %v468, %v434
  %vm485 = vcmask 257024
  %486 = vst.msk [vmem:[%s4] sm:$0xf] %vm485, %v21
  %487 = vst.msk [vmem:[%s5] sm:$0xf] %vm485, %v146
  %v496 = vcombine.low %v477, %v478
  %v497 = vcombine.low %v479, %v480
  %v498 = vcombine.low %v481, %v482
  %v499 = vcombine.low %v483, %v484
  %504 = vst [vmem:[%s6] sm:$0xff] %v496
  %505 = vst [vmem:[%s6 + $0x8] sm:$0xff] %v497
  %506 = vst [vmem:[%s6 + $0x10] sm:$0xff] %v498
  %507 = vst [vmem:[%s6 + $0x18] sm:$0xff] %v499
  // Predicated region
  $region18: #{fixed_point_layer_forward.2} parent=0 // pred_check
    _
  $region19: #{fixed_point_layer_forward.2} parent=0 // pred_check_branch
    %509 = sbr.rel (0) target = $region21
  $region20: #{fixed_point_layer_forward.2} parent=0 // pred_region
    _
  $region21: #{fixed_point_layer_forward.2} parent=0 // pred_fallthru
    _
  // Predicated region
  $region22: #{fixed_point_layer_forward.2} parent=0 // pred_check
    _
  $region23: #{fixed_point_layer_forward.2} parent=0 // pred_check_branch
    %511 = sbr.rel (0) target = $region25
  $region24: #{fixed_point_layer_forward.2} parent=0 // pred_region
    _
  $region25: #{fixed_point_layer_forward.2} parent=0 // pred_fallthru
    _
  // Predicated region
  $region26: #{fixed_point_layer_forward.2} parent=0 // pred_check
    _
  $region27: #{fixed_point_layer_forward.2} parent=0 // pred_check_branch
    %513 = sbr.rel (0) target = $region29
  $region28: #{fixed_point_layer_forward.2} parent=0 // pred_region
    _
  $region29: #{fixed_point_layer_forward.2} parent=0 // pred_fallthru
    _
  // Predicated region
  $region30: #{fixed_point_layer_forward.2} parent=0 // pred_check
    _
  $region31: #{fixed_point_layer_forward.2} parent=0 // pred_check_branch
    %515 = sbr.rel (0) target = $region33
  $region32: #{fixed_point_layer_forward.2} parent=0 // pred_region
    _
  $region33: #{fixed_point_layer_forward.2} parent=0 // pred_fallthru
    _
  // Predicated region
  $region34: #{fixed_point_layer_forward.2} parent=0 // pred_check
    _
  $region35: #{fixed_point_layer_forward.2} parent=0 // pred_check_branch
    %517 = sbr.rel (0) target = $region37
  $region36: #{fixed_point_layer_forward.2} parent=0 // pred_region
    _
  $region37: #{fixed_point_layer_forward.2} parent=0 // pred_fallthru
    _
  // Predicated region
  $region38: #{fixed_point_layer_forward.2} parent=0 // pred_check
    _
  $region39: #{fixed_point_layer_forward.2} parent=0 // pred_check_branch
    %519 = sbr.rel (0) target = $region41
  $region40: #{fixed_point_layer_forward.2} parent=0 // pred_region
    _
  $region41: #{fixed_point_layer_forward.2} parent=0 // pred_fallthru
    _

// kernel: custom-call.10
$region0: #{custom-call.10}
  %s0 = inlined_call_operand.vmem [shape: f32[4,1,32,32], index: 0, kind: input, shape index: {}]
  %s1 = inlined_call_operand.vmem [shape: f32[4,1,32,32], index: 1, kind: output, shape index: {}]
  $region1: #{custom-call.10} parent=0
    #allocation0 [shape = 'u8[32768]{0}', space=vmem, size = 0x8000, scoped, tag = 'operand span for operand 0']
    #allocation1 [shape = 'u8[32768]{0}', space=vmem, size = 0x8000, scoped, tag = 'operand span for operand 1']
    loop: start=0, step=1, limit=6
    $region2: #{custom-call.10} parent=1 // loop_pre_header
      _
    $region3: #{custom-call.10} parent=1 // loop_header
      %s3 = sphi 0, %s7
      %p4 = scmp.ge.s32.totalorder %s3, 6
      %s10 = sphi 0, %s36
      %s11 = sphi 0, %s32
      %s12 = sphi 0, %s28
      %s13 = sphi 0, %s24
      %s14 = sphi 0, %s10
      %s15 = sphi 0, %s11
      %s16 = sphi 0, %s12
      %s17 = sphi 0, %s13
      %s18 = sphi 0, %s14
      %s19 = sphi 0, %s15
      %s20 = sphi 0, %s16
      %s21 = sphi 0, %s17
    $region4: #{custom-call.10} parent=1 // loop_header_branch
      %6 = sbr.rel (%p4) target = $region8
    $region5: #{custom-call.10} parent=1 // loop_body
      %s8 = ssub.s32 %s3, 1
      %s9 = ssub.s32 %s3, 2
      %s22 = sadd.s32 1, %s13
      %p23 = scmp.ge.s32.totalorder %s22, 1
      %s24 = scalar_select %p23, 0, %s22
      %s25 = sadd.s32 1, %s12
      %s26 = scalar_select %p23, %s25, %s12
      %p27 = scmp.ge.s32.totalorder %s26, 1
      %s28 = scalar_select %p27, 0, %s26
      %s29 = sadd.s32 1, %s11
      %s30 = scalar_select %p27, %s29, %s11
      %p31 = scmp.ge.s32.totalorder %s30, 1
      %s32 = scalar_select %p31, 0, %s30
      %s33 = sadd.s32 1, %s10
      %s34 = scalar_select %p31, %s33, %s10
      %p35 = scmp.ge.s32.totalorder %s34, 4
      %s36 = scalar_select %p35, 0, %s34
      %p37 = scmp.le.s32.totalorder 1, %s3
      %p38 = scmp.lt.s32.totalorder %s3, 5
      %p39 = pnand %p37, %p38
      %p40 = pneg %p39
      // Predicated region
      $region9: #{custom-call.10} parent=5 // pred_check
        _
      $region10: #{custom-call.10} parent=5 // pred_check_branch
        %42 = sbr.rel (%p39) target = $region12
      $region11: #{custom-call.10} parent=5 // pred_region
        %s43 = ssub.s32 %s3, 1
      $region12: #{custom-call.10} parent=5 // pred_fallthru
        _
      %p44 = scmp.lt.s32.totalorder %s3, 4
      // Predicated region
      $region13: #{custom-call.10} parent=5 // pred_check
        %p45 = pneg %p44
      $region14: #{custom-call.10} parent=5 // pred_check_branch
        %47 = sbr.rel (%p45) target = $region16
      $region15: #{custom-call.10} parent=5 // pred_region
        %s48 = sand.u32 %s3, 1
        %s49 = sand.u32 %s3, 1
        %s50 = smul.addr %s49, 32
        %s51 = scalar_lea.vmem [#allocation0], %s50
        %s52 = sadd.s32 %s13, %s12
        %s53 = smul.addr %s11, 4
        %s54 = sadd.s32 %s52, %s53
        %s55 = smul.addr %s10, 4
        %s56 = sadd.s32 %s54, %s55
        %s57 = smul.addr %s56, 8
        %s58 = scalar_lea.vmem %s0, %s57
        // Predicated region
        $region17: #{custom-call.10} parent=15 // pred_check
          _
        $region18: #{custom-call.10} parent=15 // pred_check_branch
          %60 = sbr.rel (0) target = $region20
        $region19: #{custom-call.10} parent=15 // pred_region
          // Predicated region
          $region21: #{custom-call.10} parent=19 // pred_check
            _
          $region22: #{custom-call.10} parent=19 // pred_check_branch
            %62 = sbr.rel (0) target = $region24
          $region23: #{custom-call.10} parent=19 // pred_region
            // Predicated region
            $region36: #{custom-call.10} parent=23 // pred_check
              _
            $region37: #{custom-call.10} parent=23 // pred_check_branch
              %83 = sbr.rel (0) target = $region39
            $region38: #{custom-call.10} parent=23 // pred_region
              loop: start=0, step=1, limit=1
              $region40: #{custom-call.10} parent=38 // loop_pre_header
                _
              $region41: #{custom-call.10} parent=38 // loop_header
                %s85 = sphi 0, %s89
                %p86 = scmp.ge.s32.totalorder %s85, 1
                %s90 = sphi %s58, %s58
                %s91 = sphi %s51, %s51
              $region42: #{custom-call.10} parent=38 // loop_header_branch
                %88 = sbr.rel (%p86) target = $region46
              $region43: #{custom-call.10} parent=38 // loop_body
                %v92 = vld [vmem:[%s90] sm:$0xff]
                %93 = vst [vmem:[%s91] sm:$0xff] %v92
                %v94 = vld [vmem:[%s90 + $0x8] sm:$0xff]
                %95 = vst [vmem:[%s91 + $0x8] sm:$0xff] %v94
                %v96 = vld [vmem:[%s90 + $0x10] sm:$0xff]
                %97 = vst [vmem:[%s91 + $0x10] sm:$0xff] %v96
                %v98 = vld [vmem:[%s90 + $0x18] sm:$0xff]
                %99 = vst [vmem:[%s91 + $0x18] sm:$0xff] %v98
              $region44: #{custom-call.10} parent=38 // loop_footer
                %s89 = sadd.s32 1, %s85
              $region45: #{custom-call.10} parent=38 // loop_footer_branch
                %84 = sbr.rel target = $region41
              $region46: #{custom-call.10} parent=38 // loop_exit
                _
            $region39: #{custom-call.10} parent=23 // pred_fallthru
              _
            // Predicated region
            $region47: #{custom-call.10} parent=23 // pred_check
              _
            $region48: #{custom-call.10} parent=23 // pred_check_branch
              %101 = sbr.rel target = $region50
            $region49: #{custom-call.10} parent=23 // pred_region
              _
            $region50: #{custom-call.10} parent=23 // pred_fallthru
              _
          $region24: #{custom-call.10} parent=19 // pred_fallthru
            _
          // Predicated region
          $region25: #{custom-call.10} parent=19 // pred_check
            _
          $region26: #{custom-call.10} parent=19 // pred_check_branch
            %64 = sbr.rel target = $region28
          $region27: #{custom-call.10} parent=19 // pred_region
            loop: start=0, step=1, limit=1
            $region29: #{custom-call.10} parent=27 // loop_pre_header
              _
            $region30: #{custom-call.10} parent=27 // loop_header
              %s67 = sphi 0, %s71
              %p68 = scmp.ge.s32.totalorder %s67, 1
              %s72 = sphi %s58, %s58
              %s73 = sphi %s51, %s51
            $region31: #{custom-call.10} parent=27 // loop_header_branch
              %70 = sbr.rel (%p68) target = $region35
            $region32: #{custom-call.10} parent=27 // loop_body
              %v74 = vld [vmem:[%s72] sm:$0xff]
              %75 = vst [vmem:[%s73] sm:$0xff] %v74
              %v76 = vld [vmem:[%s72 + $0x8] sm:$0xff]
              %77 = vst [vmem:[%s73 + $0x8] sm:$0xff] %v76
              %v78 = vld [vmem:[%s72 + $0x10] sm:$0xff]
              %79 = vst [vmem:[%s73 + $0x10] sm:$0xff] %v78
              %v80 = vld [vmem:[%s72 + $0x18] sm:$0xff]
              %81 = vst [vmem:[%s73 + $0x18] sm:$0xff] %v80
            $region33: #{custom-call.10} parent=27 // loop_footer
              %s71 = sadd.s32 1, %s67
            $region34: #{custom-call.10} parent=27 // loop_footer_branch
              %66 = sbr.rel target = $region30
            $region35: #{custom-call.10} parent=27 // loop_exit
              _
          $region28: #{custom-call.10} parent=19 // pred_fallthru
            _
        $region20: #{custom-call.10} parent=15 // pred_fallthru
          _
        %102 = vnop
      $region16: #{custom-call.10} parent=5 // pred_fallthru
        _
      %p103 = scmp.le.s32.totalorder 1, %s3
      %p104 = scmp.lt.s32.totalorder %s3, 5
      %p105 = pnand %p103, %p104
      %p106 = pneg %p105
      // Predicated region
      $region51: #{custom-call.10} parent=5 // pred_check
        _
      $region52: #{custom-call.10} parent=5 // pred_check_branch
        %108 = sbr.rel (%p105) target = $region54
      $region53: #{custom-call.10} parent=5 // pred_region
        #allocation2 [shape = 'f32[32,32]{1,0}', space=vmem, size = 0x4000, scoped, tag = 'rescaled input a']
        %s109 = ssub.s32 %s3, 1
        %s110 = sand.u32 %s8, 1
        %s111 = sand.u32 %s8, 1
        %s112 = smul.addr %s111, 32
        %s113 = scalar_lea.vmem [#allocation0], %s112
        %s114 = sand.u32 %s8, 1
        %s115 = sand.u32 %s8, 1
        %s116 = smul.addr %s115, 32
        %s117 = scalar_lea.vmem [#allocation0], %s116
        %s118 = sand.u32 %s8, 1
        %s119 = sand.u32 %s8, 1
        %s120 = smul.addr %s119, 32
        %s121 = scalar_lea.vmem [#allocation1], %s120
        %v122 = vlaneseq
        %v123 = vand.u32 %v122, 127
        %vm124 = vcmp.lt.s32.totalorder %v123, 32
        %v125 = vlaneseq
        %v126 = vshrl.u32 %v125, 7
        %vm128 = vcmp.eq.s32.totalorder %v126, %v123
        %v129 = vld [vmem:[%s113] sm:$0xff]
        %v130 = vsel %vm128, %v129, 0.0
        %131 = vadd.xlane.f32.xlu0 %v130
        %v132 = vpop.xlane.xlu0 %131
        %vm133 = vcmp.ge.s32.totalorder %v126, %v123
        %vm134 = vmand %vm133, %vm124
        %v135 = vsel %vm134, %v129, 0.0
        %v136 = vrcp.pop %v132
        %v137 = vmul.f32 %v135, %v136
        %138 = vst [vmem:[#allocation2] sm:$0xff] %v137
        %s139 = scalar_lea.vmem %s113, 8 [#allocation0]
        %s140 = scalar_lea.vmem [#allocation2], 8
        %v141 = vlaneseq
        %v142 = vshrl.u32 %v141, 7
        %v143 = vadd.s32 %v142, 8
        %vm144 = vcmp.eq.s32.totalorder %v143, %v123
        %v145 = vld [vmem:[%s139] sm:$0xff]
        %v146 = vsel %vm144, %v145, 0.0
        %147 = vadd.xlane.f32.xlu0 %v146
        %v148 = vpop.xlane.xlu0 %147
        %vm149 = vcmp.ge.s32.totalorder %v143, %v123
        %vm150 = vmand %vm149, %vm124
        %v151 = vsel %vm150, %v145, 0.0
        %v152 = vrcp.pop %v148
        %v153 = vmul.f32 %v151, %v152
        %154 = vst [vmem:[%s140] sm:$0xff] %v153
        %s155 = scalar_lea.vmem %s113, 16 [#allocation0]
        %s156 = scalar_lea.vmem [#allocation2], 16
        %v157 = vlaneseq
        %v158 = vshrl.u32 %v157, 7
        %v159 = vadd.s32 %v158, 16
        %vm160 = vcmp.eq.s32.totalorder %v159, %v123
        %v161 = vld [vmem:[%s155] sm:$0xff]
        %v162 = vsel %vm160, %v161, 0.0
        %163 = vadd.xlane.f32.xlu0 %v162
        %v164 = vpop.xlane.xlu0 %163
        %vm165 = vcmp.ge.s32.totalorder %v159, %v123
        %vm166 = vmand %vm165, %vm124
        %v167 = vsel %vm166, %v161, 0.0
        %v168 = vrcp.pop %v164
        %v169 = vmul.f32 %v167, %v168
        %170 = vst [vmem:[%s156] sm:$0xff] %v169
        %s171 = scalar_lea.vmem %s113, 24 [#allocation0]
        %s172 = scalar_lea.vmem [#allocation2], 24
        %v173 = vlaneseq
        %v174 = vshrl.u32 %v173, 7
        %v175 = vadd.s32 %v174, 24
        %vm176 = vcmp.eq.s32.totalorder %v175, %v123
        %v177 = vld [vmem:[%s171] sm:$0xff]
        %v178 = vsel %vm176, %v177, 0.0
        %179 = vadd.xlane.f32.xlu0 %v178
        %v180 = vpop.xlane.xlu0 %179
        %vm181 = vcmp.ge.s32.totalorder %v175, %v123
        %vm182 = vmand %vm181, %vm124
        %v183 = vsel %vm182, %v177, 0.0
        %v184 = vrcp.pop %v180
        %v185 = vmul.f32 %v183, %v184
        %186 = vst [vmem:[%s172] sm:$0xff] %v185
        %v187 = vlaneseq
        %v188 = vand.u32 %v187, 127
        %v189 = vlaneseq
        %v190 = vshrl.u32 %v189, 7
        %vm192 = vcmp.eq.s32.totalorder %v188, %v190
        %v193 = vlaneseq
        %v194 = vand.u32 %v193, 127
        %vm195 = vcmp.eq.s32.totalorder %v194, 0
        %v196 = vsel %vm195, 1.0, -1.0
        %v197 = vsel %vm192, %v196, 0.0
        %v198 = vlaneseq
        %v199 = vand.u32 %v198, 127
        %v200 = vlaneseq
        %v201 = vshrl.u32 %v200, 7
        %v202 = vadd.s32 %v201, 8
        %vm203 = vcmp.eq.s32.totalorder %v199, %v202
        %v204 = vsel %vm203, -1.0, 0.0
        %v205 = vlaneseq
        %v206 = vand.u32 %v205, 127
        %v207 = vlaneseq
        %v208 = vshrl.u32 %v207, 7
        %v209 = vadd.s32 %v208, 16
        %vm210 = vcmp.eq.s32.totalorder %v206, %v209
        %v211 = vsel %vm210, -1.0, 0.0
        %v212 = vlaneseq
        %v213 = vand.u32 %v212, 127
        %v214 = vlaneseq
        %v215 = vshrl.u32 %v214, 7
        %v216 = vadd.s32 %v215, 24
        %vm217 = vcmp.eq.s32.totalorder %v213, %v216
        %v218 = vsel %vm217, -1.0, 0.0
        %s219 = scalar_lea.vmem [#allocation2], 1
        %v220 = vld [vmem:[%s219] ss:$0 sm:$0xff]
        %v221 = vxor.u32 %v220, 2147483648
        %v222 = vlaneseq
        %v223 = vand.u32 %v222, 127
        %vm224 = vcmp.eq.s32.totalorder %v223, 1
        %v225 = vmul.f32 %v221, %v197
        %226 = vadd.xlane.f32.xlu0 %v225
        %v227 = vpop.xlane.xlu0 %226
        %v228 = vsel %vm224, %v227, %v197
        %s229 = scalar_lea.vmem [#allocation2], 2
        %v230 = vld [vmem:[%s229] ss:$0 sm:$0xff]
        %v231 = vxor.u32 %v230, 2147483648
        %v232 = vlaneseq
        %v233 = vand.u32 %v232, 127
        %vm234 = vcmp.eq.s32.totalorder %v233, 2
        %v235 = vmul.f32 %v231, %v228
        %236 = vadd.xlane.f32.xlu0 %v235
        %v237 = vpop.xlane.xlu0 %236
        %v238 = vsel %vm234, %v237, %v228
        %s239 = scalar_lea.vmem [#allocation2], 3
        %v240 = vld [vmem:[%s239] ss:$0 sm:$0xff]
        %v241 = vxor.u32 %v240, 2147483648
        %v242 = vlaneseq
        %v243 = vand.u32 %v242, 127
        %vm244 = vcmp.eq.s32.totalorder %v243, 3
        %v245 = vmul.f32 %v241, %v238
        %246 = vadd.xlane.f32.xlu0 %v245
        %v247 = vpop.xlane.xlu0 %246
        %v248 = vsel %vm244, %v247, %v238
        %s249 = scalar_lea.vmem [#allocation2], 4
        %v250 = vld [vmem:[%s249] ss:$0 sm:$0xff]
        %v251 = vxor.u32 %v250, 2147483648
        %v252 = vlaneseq
        %v253 = vand.u32 %v252, 127
        %vm254 = vcmp.eq.s32.totalorder %v253, 4
        %v255 = vmul.f32 %v251, %v248
        %256 = vadd.xlane.f32.xlu0 %v255
        %v257 = vpop.xlane.xlu0 %256
        %v258 = vsel %vm254, %v257, %v248
        %s259 = scalar_lea.vmem [#allocation2], 5
        %v260 = vld [vmem:[%s259] ss:$0 sm:$0xff]
        %v261 = vxor.u32 %v260, 2147483648
        %v262 = vlaneseq
        %v263 = vand.u32 %v262, 127
        %vm264 = vcmp.eq.s32.totalorder %v263, 5
        %v265 = vmul.f32 %v261, %v258
        %266 = vadd.xlane.f32.xlu0 %v265
        %v267 = vpop.xlane.xlu0 %266
        %v268 = vsel %vm264, %v267, %v258
        %s269 = scalar_lea.vmem [#allocation2], 6
        %v270 = vld [vmem:[%s269] ss:$0 sm:$0xff]
        %v271 = vxor.u32 %v270, 2147483648
        %v272 = vlaneseq
        %v273 = vand.u32 %v272, 127
        %vm274 = vcmp.eq.s32.totalorder %v273, 6
        %v275 = vmul.f32 %v271, %v268
        %276 = vadd.xlane.f32.xlu0 %v275
        %v277 = vpop.xlane.xlu0 %276
        %v278 = vsel %vm274, %v277, %v268
        %s279 = scalar_lea.vmem [#allocation2], 7
        %v280 = vld [vmem:[%s279] ss:$0 sm:$0xff]
        %v281 = vxor.u32 %v280, 2147483648
        %v282 = vlaneseq
        %v283 = vand.u32 %v282, 127
        %vm284 = vcmp.eq.s32.totalorder %v283, 7
        %v285 = vmul.f32 %v281, %v278
        %286 = vadd.xlane.f32.xlu0 %v285
        %v287 = vpop.xlane.xlu0 %286
        %v288 = vsel %vm284, %v287, %v278
        %s289 = scalar_lea.vmem [#allocation2], 8
        %v290 = vld [vmem:[%s289] ss:$0 sm:$0xff]
        %v291 = vxor.u32 %v290, 2147483648
        %v292 = vlaneseq
        %v293 = vand.u32 %v292, 127
        %vm294 = vcmp.eq.s32.totalorder %v293, 8
        %v295 = vmul.f32 %v291, %v288
        %296 = vadd.xlane.f32.xlu0 %v295
        %v297 = vpop.xlane.xlu0 %296
        %v298 = vsel %vm294, %v297, %v288
        %v299 = vmul.f32 %v291, %v204
        %300 = vadd.xlane.f32.xlu0 %v299
        %v301 = vpop.xlane.xlu0 %300
        %v302 = vsel %vm294, %v301, %v204
        %s303 = scalar_lea.vmem [#allocation2], 9
        %v304 = vld [vmem:[%s303] ss:$0 sm:$0xff]
        %v305 = vxor.u32 %v304, 2147483648
        %v306 = vlaneseq
        %v307 = vand.u32 %v306, 127
        %vm308 = vcmp.eq.s32.totalorder %v307, 9
        %v309 = vmul.f32 %v305, %v298
        %310 = vadd.xlane.f32.xlu0 %v309
        %v311 = vpop.xlane.xlu0 %310
        %v312 = vsel %vm308, %v311, %v298
        %v313 = vmul.f32 %v305, %v302
        %314 = vadd.xlane.f32.xlu0 %v313
        %v315 = vpop.xlane.xlu0 %314
        %v316 = vsel %vm308, %v315, %v302
        %s317 = scalar_lea.vmem [#allocation2], 10
        %v318 = vld [vmem:[%s317] ss:$0 sm:$0xff]
        %v319 = vxor.u32 %v318, 2147483648
        %v320 = vlaneseq
        %v321 = vand.u32 %v320, 127
        %vm322 = vcmp.eq.s32.totalorder %v321, 10
        %v323 = vmul.f32 %v319, %v312
        %324 = vadd.xlane.f32.xlu0 %v323
        %v325 = vpop.xlane.xlu0 %324
        %v326 = vsel %vm322, %v325, %v312
        %v327 = vmul.f32 %v319, %v316
        %328 = vadd.xlane.f32.xlu0 %v327
        %v329 = vpop.xlane.xlu0 %328
        %v330 = vsel %vm322, %v329, %v316
        %s331 = scalar_lea.vmem [#allocation2], 11
        %v332 = vld [vmem:[%s331] ss:$0 sm:$0xff]
        %v333 = vxor.u32 %v332, 2147483648
        %v334 = vlaneseq
        %v335 = vand.u32 %v334, 127
        %vm336 = vcmp.eq.s32.totalorder %v335, 11
        %v337 = vmul.f32 %v333, %v326
        %338 = vadd.xlane.f32.xlu0 %v337
        %v339 = vpop.xlane.xlu0 %338
        %v340 = vsel %vm336, %v339, %v326
        %v341 = vmul.f32 %v333, %v330
        %342 = vadd.xlane.f32.xlu0 %v341
        %v343 = vpop.xlane.xlu0 %342
        %v344 = vsel %vm336, %v343, %v330
        %s345 = scalar_lea.vmem [#allocation2], 12
        %v346 = vld [vmem:[%s345] ss:$0 sm:$0xff]
        %v347 = vxor.u32 %v346, 2147483648
        %v348 = vlaneseq
        %v349 = vand.u32 %v348, 127
        %vm350 = vcmp.eq.s32.totalorder %v349, 12
        %v351 = vmul.f32 %v347, %v340
        %352 = vadd.xlane.f32.xlu0 %v351
        %v353 = vpop.xlane.xlu0 %352
        %v354 = vsel %vm350, %v353, %v340
        %v355 = vmul.f32 %v347, %v344
        %356 = vadd.xlane.f32.xlu0 %v355
        %v357 = vpop.xlane.xlu0 %356
        %v358 = vsel %vm350, %v357, %v344
        %s359 = scalar_lea.vmem [#allocation2], 13
        %v360 = vld [vmem:[%s359] ss:$0 sm:$0xff]
        %v361 = vxor.u32 %v360, 2147483648
        %v362 = vlaneseq
        %v363 = vand.u32 %v362, 127
        %vm364 = vcmp.eq.s32.totalorder %v363, 13
        %v365 = vmul.f32 %v361, %v354
        %366 = vadd.xlane.f32.xlu0 %v365
        %v367 = vpop.xlane.xlu0 %366
        %v368 = vsel %vm364, %v367, %v354
        %v369 = vmul.f32 %v361, %v358
        %370 = vadd.xlane.f32.xlu0 %v369
        %v371 = vpop.xlane.xlu0 %370
        %v372 = vsel %vm364, %v371, %v358
        %s373 = scalar_lea.vmem [#allocation2], 14
        %v374 = vld [vmem:[%s373] ss:$0 sm:$0xff]
        %v375 = vxor.u32 %v374, 2147483648
        %v376 = vlaneseq
        %v377 = vand.u32 %v376, 127
        %vm378 = vcmp.eq.s32.totalorder %v377, 14
        %v379 = vmul.f32 %v375, %v368
        %380 = vadd.xlane.f32.xlu0 %v379
        %v381 = vpop.xlane.xlu0 %380
        %v382 = vsel %vm378, %v381, %v368
        %v383 = vmul.f32 %v375, %v372
        %384 = vadd.xlane.f32.xlu0 %v383
        %v385 = vpop.xlane.xlu0 %384
        %v386 = vsel %vm378, %v385, %v372
        %s387 = scalar_lea.vmem [#allocation2], 15
        %v388 = vld [vmem:[%s387] ss:$0 sm:$0xff]
        %v389 = vxor.u32 %v388, 2147483648
        %v390 = vlaneseq
        %v391 = vand.u32 %v390, 127
        %vm392 = vcmp.eq.s32.totalorder %v391, 15
        %v393 = vmul.f32 %v389, %v382
        %394 = vadd.xlane.f32.xlu0 %v393
        %v395 = vpop.xlane.xlu0 %394
        %v396 = vsel %vm392, %v395, %v382
        %v397 = vmul.f32 %v389, %v386
        %398 = vadd.xlane.f32.xlu0 %v397
        %v399 = vpop.xlane.xlu0 %398
        %v400 = vsel %vm392, %v399, %v386
        %s401 = scalar_lea.vmem [#allocation2], 16
        %v402 = vld [vmem:[%s401] ss:$0 sm:$0xff]
        %v403 = vxor.u32 %v402, 2147483648
        %v404 = vlaneseq
        %v405 = vand.u32 %v404, 127
        %vm406 = vcmp.eq.s32.totalorder %v405, 16
        %v407 = vmul.f32 %v403, %v396
        %408 = vadd.xlane.f32.xlu0 %v407
        %v409 = vpop.xlane.xlu0 %408
        %v410 = vsel %vm406, %v409, %v396
        %v411 = vmul.f32 %v403, %v400
        %412 = vadd.xlane.f32.xlu0 %v411
        %v413 = vpop.xlane.xlu0 %412
        %v414 = vsel %vm406, %v413, %v400
        %v415 = vmul.f32 %v403, %v211
        %416 = vadd.xlane.f32.xlu0 %v415
        %v417 = vpop.xlane.xlu0 %416
        %v418 = vsel %vm406, %v417, %v211
        %s419 = scalar_lea.vmem [#allocation2], 17
        %v420 = vld [vmem:[%s419] ss:$0 sm:$0xff]
        %v421 = vxor.u32 %v420, 2147483648
        %v422 = vlaneseq
        %v423 = vand.u32 %v422, 127
        %vm424 = vcmp.eq.s32.totalorder %v423, 17
        %v425 = vmul.f32 %v421, %v410
        %426 = vadd.xlane.f32.xlu0 %v425
        %v427 = vpop.xlane.xlu0 %426
        %v428 = vsel %vm424, %v427, %v410
        %v429 = vmul.f32 %v421, %v414
        %430 = vadd.xlane.f32.xlu0 %v429
        %v431 = vpop.xlane.xlu0 %430
        %v432 = vsel %vm424, %v431, %v414
        %v433 = vmul.f32 %v421, %v418
        %434 = vadd.xlane.f32.xlu0 %v433
        %v435 = vpop.xlane.xlu0 %434
        %v436 = vsel %vm424, %v435, %v418
        %s437 = scalar_lea.vmem [#allocation2], 18
        %v438 = vld [vmem:[%s437] ss:$0 sm:$0xff]
        %v439 = vxor.u32 %v438, 2147483648
        %v440 = vlaneseq
        %v441 = vand.u32 %v440, 127
        %vm442 = vcmp.eq.s32.totalorder %v441, 18
        %v443 = vmul.f32 %v439, %v428
        %444 = vadd.xlane.f32.xlu0 %v443
        %v445 = vpop.xlane.xlu0 %444
        %v446 = vsel %vm442, %v445, %v428
        %v447 = vmul.f32 %v439, %v432
        %448 = vadd.xlane.f32.xlu0 %v447
        %v449 = vpop.xlane.xlu0 %448
        %v450 = vsel %vm442, %v449, %v432
        %v451 = vmul.f32 %v439, %v436
        %452 = vadd.xlane.f32.xlu0 %v451
        %v453 = vpop.xlane.xlu0 %452
        %v454 = vsel %vm442, %v453, %v436
        %s455 = scalar_lea.vmem [#allocation2], 19
        %v456 = vld [vmem:[%s455] ss:$0 sm:$0xff]
        %v457 = vxor.u32 %v456, 2147483648
        %v458 = vlaneseq
        %v459 = vand.u32 %v458, 127
        %vm460 = vcmp.eq.s32.totalorder %v459, 19
        %v461 = vmul.f32 %v457, %v446
        %462 = vadd.xlane.f32.xlu0 %v461
        %v463 = vpop.xlane.xlu0 %462
        %v464 = vsel %vm460, %v463, %v446
        %v465 = vmul.f32 %v457, %v450
        %466 = vadd.xlane.f32.xlu0 %v465
        %v467 = vpop.xlane.xlu0 %466
        %v468 = vsel %vm460, %v467, %v450
        %v469 = vmul.f32 %v457, %v454
        %470 = vadd.xlane.f32.xlu0 %v469
        %v471 = vpop.xlane.xlu0 %470
        %v472 = vsel %vm460, %v471, %v454
        %s473 = scalar_lea.vmem [#allocation2], 20
        %v474 = vld [vmem:[%s473] ss:$0 sm:$0xff]
        %v475 = vxor.u32 %v474, 2147483648
        %v476 = vlaneseq
        %v477 = vand.u32 %v476, 127
        %vm478 = vcmp.eq.s32.totalorder %v477, 20
        %v479 = vmul.f32 %v475, %v464
        %480 = vadd.xlane.f32.xlu0 %v479
        %v481 = vpop.xlane.xlu0 %480
        %v482 = vsel %vm478, %v481, %v464
        %v483 = vmul.f32 %v475, %v468
        %484 = vadd.xlane.f32.xlu0 %v483
        %v485 = vpop.xlane.xlu0 %484
        %v486 = vsel %vm478, %v485, %v468
        %v487 = vmul.f32 %v475, %v472
        %488 = vadd.xlane.f32.xlu0 %v487
        %v489 = vpop.xlane.xlu0 %488
        %v490 = vsel %vm478, %v489, %v472
        %s491 = scalar_lea.vmem [#allocation2], 21
        %v492 = vld [vmem:[%s491] ss:$0 sm:$0xff]
        %v493 = vxor.u32 %v492, 2147483648
        %v494 = vlaneseq
        %v495 = vand.u32 %v494, 127
        %vm496 = vcmp.eq.s32.totalorder %v495, 21
        %v497 = vmul.f32 %v493, %v482
        %498 = vadd.xlane.f32.xlu0 %v497
        %v499 = vpop.xlane.xlu0 %498
        %v500 = vsel %vm496, %v499, %v482
        %v501 = vmul.f32 %v493, %v486
        %502 = vadd.xlane.f32.xlu0 %v501
        %v503 = vpop.xlane.xlu0 %502
        %v504 = vsel %vm496, %v503, %v486
        %v505 = vmul.f32 %v493, %v490
        %506 = vadd.xlane.f32.xlu0 %v505
        %v507 = vpop.xlane.xlu0 %506
        %v508 = vsel %vm496, %v507, %v490
        %s509 = scalar_lea.vmem [#allocation2], 22
        %v510 = vld [vmem:[%s509] ss:$0 sm:$0xff]
        %v511 = vxor.u32 %v510, 2147483648
        %v512 = vlaneseq
        %v513 = vand.u32 %v512, 127
        %vm514 = vcmp.eq.s32.totalorder %v513, 22
        %v515 = vmul.f32 %v511, %v500
        %516 = vadd.xlane.f32.xlu0 %v515
        %v517 = vpop.xlane.xlu0 %516
        %v518 = vsel %vm514, %v517, %v500
        %v519 = vmul.f32 %v511, %v504
        %520 = vadd.xlane.f32.xlu0 %v519
        %v521 = vpop.xlane.xlu0 %520
        %v522 = vsel %vm514, %v521, %v504
        %v523 = vmul.f32 %v511, %v508
        %524 = vadd.xlane.f32.xlu0 %v523
        %v525 = vpop.xlane.xlu0 %524
        %v526 = vsel %vm514, %v525, %v508
        %s527 = scalar_lea.vmem [#allocation2], 23
        %v528 = vld [vmem:[%s527] ss:$0 sm:$0xff]
        %v529 = vxor.u32 %v528, 2147483648
        %v530 = vlaneseq
        %v531 = vand.u32 %v530, 127
        %vm532 = vcmp.eq.s32.totalorder %v531, 23
        %v533 = vmul.f32 %v529, %v518
        %534 = vadd.xlane.f32.xlu0 %v533
        %v535 = vpop.xlane.xlu0 %534
        %v536 = vsel %vm532, %v535, %v518
        %v537 = vmul.f32 %v529, %v522
        %538 = vadd.xlane.f32.xlu0 %v537
        %v539 = vpop.xlane.xlu0 %538
        %v540 = vsel %vm532, %v539, %v522
        %v541 = vmul.f32 %v529, %v526
        %542 = vadd.xlane.f32.xlu0 %v541
        %v543 = vpop.xlane.xlu0 %542
        %v544 = vsel %vm532, %v543, %v526
        %s545 = scalar_lea.vmem [#allocation2], 24
        %v546 = vld [vmem:[%s545] ss:$0 sm:$0xff]
        %v547 = vxor.u32 %v546, 2147483648
        %v548 = vlaneseq
        %v549 = vand.u32 %v548, 127
        %vm550 = vcmp.eq.s32.totalorder %v549, 24
        %v551 = vmul.f32 %v547, %v536
        %552 = vadd.xlane.f32.xlu0 %v551
        %v553 = vpop.xlane.xlu0 %552
        %v554 = vsel %vm550, %v553, %v536
        %v555 = vmul.f32 %v547, %v540
        %556 = vadd.xlane.f32.xlu0 %v555
        %v557 = vpop.xlane.xlu0 %556
        %v558 = vsel %vm550, %v557, %v540
        %v559 = vmul.f32 %v547, %v544
        %560 = vadd.xlane.f32.xlu0 %v559
        %v561 = vpop.xlane.xlu0 %560
        %v562 = vsel %vm550, %v561, %v544
        %v563 = vmul.f32 %v547, %v218
        %564 = vadd.xlane.f32.xlu0 %v563
        %v565 = vpop.xlane.xlu0 %564
        %v566 = vsel %vm550, %v565, %v218
        %s567 = scalar_lea.vmem [#allocation2], 25
        %v568 = vld [vmem:[%s567] ss:$0 sm:$0xff]
        %v569 = vxor.u32 %v568, 2147483648
        %v570 = vlaneseq
        %v571 = vand.u32 %v570, 127
        %vm572 = vcmp.eq.s32.totalorder %v571, 25
        %v573 = vmul.f32 %v569, %v554
        %574 = vadd.xlane.f32.xlu0 %v573
        %v575 = vpop.xlane.xlu0 %574
        %v576 = vsel %vm572, %v575, %v554
        %v577 = vmul.f32 %v569, %v558
        %578 = vadd.xlane.f32.xlu0 %v577
        %v579 = vpop.xlane.xlu0 %578
        %v580 = vsel %vm572, %v579, %v558
        %v581 = vmul.f32 %v569, %v562
        %582 = vadd.xlane.f32.xlu0 %v581
        %v583 = vpop.xlane.xlu0 %582
        %v584 = vsel %vm572, %v583, %v562
        %v585 = vmul.f32 %v569, %v566
        %586 = vadd.xlane.f32.xlu0 %v585
        %v587 = vpop.xlane.xlu0 %586
        %v588 = vsel %vm572, %v587, %v566
        %s589 = scalar_lea.vmem [#allocation2], 26
        %v590 = vld [vmem:[%s589] ss:$0 sm:$0xff]
        %v591 = vxor.u32 %v590, 2147483648
        %v592 = vlaneseq
        %v593 = vand.u32 %v592, 127
        %vm594 = vcmp.eq.s32.totalorder %v593, 26
        %v595 = vmul.f32 %v591, %v576
        %596 = vadd.xlane.f32.xlu0 %v595
        %v597 = vpop.xlane.xlu0 %596
        %v598 = vsel %vm594, %v597, %v576
        %v599 = vmul.f32 %v591, %v580
        %600 = vadd.xlane.f32.xlu0 %v599
        %v601 = vpop.xlane.xlu0 %600
        %v602 = vsel %vm594, %v601, %v580
        %v603 = vmul.f32 %v591, %v584
        %604 = vadd.xlane.f32.xlu0 %v603
        %v605 = vpop.xlane.xlu0 %604
        %v606 = vsel %vm594, %v605, %v584
        %v607 = vmul.f32 %v591, %v588
        %608 = vadd.xlane.f32.xlu0 %v607
        %v609 = vpop.xlane.xlu0 %608
        %v610 = vsel %vm594, %v609, %v588
        %s611 = scalar_lea.vmem [#allocation2], 27
        %v612 = vld [vmem:[%s611] ss:$0 sm:$0xff]
        %v613 = vxor.u32 %v612, 2147483648
        %v614 = vlaneseq
        %v615 = vand.u32 %v614, 127
        %vm616 = vcmp.eq.s32.totalorder %v615, 27
        %v617 = vmul.f32 %v613, %v598
        %618 = vadd.xlane.f32.xlu0 %v617
        %v619 = vpop.xlane.xlu0 %618
        %v620 = vsel %vm616, %v619, %v598
        %v621 = vmul.f32 %v613, %v602
        %622 = vadd.xlane.f32.xlu0 %v621
        %v623 = vpop.xlane.xlu0 %622
        %v624 = vsel %vm616, %v623, %v602
        %v625 = vmul.f32 %v613, %v606
        %626 = vadd.xlane.f32.xlu0 %v625
        %v627 = vpop.xlane.xlu0 %626
        %v628 = vsel %vm616, %v627, %v606
        %v629 = vmul.f32 %v613, %v610
        %630 = vadd.xlane.f32.xlu0 %v629
        %v631 = vpop.xlane.xlu0 %630
        %v632 = vsel %vm616, %v631, %v610
        %s633 = scalar_lea.vmem [#allocation2], 28
        %v634 = vld [vmem:[%s633] ss:$0 sm:$0xff]
        %v635 = vxor.u32 %v634, 2147483648
        %v636 = vlaneseq
        %v637 = vand.u32 %v636, 127
        %vm638 = vcmp.eq.s32.totalorder %v637, 28
        %v639 = vmul.f32 %v635, %v620
        %640 = vadd.xlane.f32.xlu0 %v639
        %v641 = vpop.xlane.xlu0 %640
        %v642 = vsel %vm638, %v641, %v620
        %v643 = vmul.f32 %v635, %v624
        %644 = vadd.xlane.f32.xlu0 %v643
        %v645 = vpop.xlane.xlu0 %644
        %v646 = vsel %vm638, %v645, %v624
        %v647 = vmul.f32 %v635, %v628
        %648 = vadd.xlane.f32.xlu0 %v647
        %v649 = vpop.xlane.xlu0 %648
        %v650 = vsel %vm638, %v649, %v628
        %v651 = vmul.f32 %v635, %v632
        %652 = vadd.xlane.f32.xlu0 %v651
        %v653 = vpop.xlane.xlu0 %652
        %v654 = vsel %vm638, %v653, %v632
        %s655 = scalar_lea.vmem [#allocation2], 29
        %v656 = vld [vmem:[%s655] ss:$0 sm:$0xff]
        %v657 = vxor.u32 %v656, 2147483648
        %v658 = vlaneseq
        %v659 = vand.u32 %v658, 127
        %vm660 = vcmp.eq.s32.totalorder %v659, 29
        %v661 = vmul.f32 %v657, %v642
        %662 = vadd.xlane.f32.xlu0 %v661
        %v663 = vpop.xlane.xlu0 %662
        %v664 = vsel %vm660, %v663, %v642
        %v665 = vmul.f32 %v657, %v646
        %666 = vadd.xlane.f32.xlu0 %v665
        %v667 = vpop.xlane.xlu0 %666
        %v668 = vsel %vm660, %v667, %v646
        %v669 = vmul.f32 %v657, %v650
        %670 = vadd.xlane.f32.xlu0 %v669
        %v671 = vpop.xlane.xlu0 %670
        %v672 = vsel %vm660, %v671, %v650
        %v673 = vmul.f32 %v657, %v654
        %674 = vadd.xlane.f32.xlu0 %v673
        %v675 = vpop.xlane.xlu0 %674
        %v676 = vsel %vm660, %v675, %v654
        %s677 = scalar_lea.vmem [#allocation2], 30
        %v678 = vld [vmem:[%s677] ss:$0 sm:$0xff]
        %v679 = vxor.u32 %v678, 2147483648
        %v680 = vlaneseq
        %v681 = vand.u32 %v680, 127
        %vm682 = vcmp.eq.s32.totalorder %v681, 30
        %v683 = vmul.f32 %v679, %v664
        %684 = vadd.xlane.f32.xlu0 %v683
        %v685 = vpop.xlane.xlu0 %684
        %v686 = vsel %vm682, %v685, %v664
        %v687 = vmul.f32 %v679, %v668
        %688 = vadd.xlane.f32.xlu0 %v687
        %v689 = vpop.xlane.xlu0 %688
        %v690 = vsel %vm682, %v689, %v668
        %v691 = vmul.f32 %v679, %v672
        %692 = vadd.xlane.f32.xlu0 %v691
        %v693 = vpop.xlane.xlu0 %692
        %v694 = vsel %vm682, %v693, %v672
        %v695 = vmul.f32 %v679, %v676
        %696 = vadd.xlane.f32.xlu0 %v695
        %v697 = vpop.xlane.xlu0 %696
        %v698 = vsel %vm682, %v697, %v676
        %s699 = scalar_lea.vmem [#allocation2], 31
        %v700 = vld [vmem:[%s699] ss:$0 sm:$0xff]
        %v701 = vxor.u32 %v700, 2147483648
        %v702 = vlaneseq
        %v703 = vand.u32 %v702, 127
        %vm704 = vcmp.eq.s32.totalorder %v703, 31
        %v705 = vmul.f32 %v701, %v686
        %706 = vadd.xlane.f32.xlu0 %v705
        %v707 = vpop.xlane.xlu0 %706
        %v708 = vsel %vm704, %v707, %v686
        %v709 = vmul.f32 %v701, %v690
        %710 = vadd.xlane.f32.xlu0 %v709
        %v711 = vpop.xlane.xlu0 %710
        %v712 = vsel %vm704, %v711, %v690
        %v713 = vmul.f32 %v701, %v694
        %714 = vadd.xlane.f32.xlu0 %v713
        %v715 = vpop.xlane.xlu0 %714
        %v716 = vsel %vm704, %v715, %v694
        %v717 = vmul.f32 %v701, %v698
        %718 = vadd.xlane.f32.xlu0 %v717
        %v719 = vpop.xlane.xlu0 %718
        %v720 = vsel %vm704, %v719, %v698
        %v721 = vrcp.pop %v132
        %v722 = vmul.f32 %v708, %v721
        %vm723 = vweird.f32 %v132
        %v724 = vsel %vm723, %v708, %v722
        %725 = vst [vmem:[%s121] sm:$0xff] %v724
        %v726 = vrcp.pop %v148
        %v727 = vmul.f32 %v712, %v726
        %vm728 = vweird.f32 %v148
        %v729 = vsel %vm728, %v712, %v727
        %s730 = scalar_lea.vmem %s121, 8 [#allocation1]
        %731 = vst [vmem:[%s730] sm:$0xff] %v729
        %v732 = vrcp.pop %v164
        %v733 = vmul.f32 %v716, %v732
        %vm734 = vweird.f32 %v164
        %v735 = vsel %vm734, %v716, %v733
        %s736 = scalar_lea.vmem %s121, 16 [#allocation1]
        %737 = vst [vmem:[%s736] sm:$0xff] %v735
        %v738 = vrcp.pop %v180
        %v739 = vmul.f32 %v720, %v738
        %vm740 = vweird.f32 %v180
        %v741 = vsel %vm740, %v720, %v739
        %s742 = scalar_lea.vmem %s121, 24 [#allocation1]
        %743 = vst [vmem:[%s742] sm:$0xff] %v741
        %s744 = sand.u32 %s8, 1
        %s745 = sand.u32 %s8, 1
        %s746 = smul.addr %s745, 32
        %s747 = scalar_lea.vmem [#allocation1], %s746
        %s748 = sadd.s32 %s17, %s16
        %s749 = smul.addr %s15, 4
        %s750 = sadd.s32 %s748, %s749
        %s751 = smul.addr %s14, 4
        %s752 = sadd.s32 %s750, %s751
        %s753 = smul.addr %s752, 8
        %s754 = scalar_lea.vmem %s1, %s753
        // Predicated region
        $region55: #{custom-call.10} parent=53 // pred_check
          _
        $region56: #{custom-call.10} parent=53 // pred_check_branch
          %756 = sbr.rel (0) target = $region58
        $region57: #{custom-call.10} parent=53 // pred_region
          // Predicated region
          $region59: #{custom-call.10} parent=57 // pred_check
            _
          $region60: #{custom-call.10} parent=57 // pred_check_branch
            %758 = sbr.rel (0) target = $region62
          $region61: #{custom-call.10} parent=57 // pred_region
            // Predicated region
            $region74: #{custom-call.10} parent=61 // pred_check
              _
            $region75: #{custom-call.10} parent=61 // pred_check_branch
              %779 = sbr.rel (0) target = $region77
            $region76: #{custom-call.10} parent=61 // pred_region
              loop: start=0, step=1, limit=1
              $region78: #{custom-call.10} parent=76 // loop_pre_header
                _
              $region79: #{custom-call.10} parent=76 // loop_header
                %s781 = sphi 0, %s785
                %p782 = scmp.ge.s32.totalorder %s781, 1
                %s786 = sphi %s747, %s747
                %s787 = sphi %s754, %s754
              $region80: #{custom-call.10} parent=76 // loop_header_branch
                %784 = sbr.rel (%p782) target = $region84
              $region81: #{custom-call.10} parent=76 // loop_body
                %v788 = vld [vmem:[%s786] sm:$0xff]
                %789 = vst [vmem:[%s787] sm:$0xff] %v788
                %v790 = vld [vmem:[%s786 + $0x8] sm:$0xff]
                %791 = vst [vmem:[%s787 + $0x8] sm:$0xff] %v790
                %v792 = vld [vmem:[%s786 + $0x10] sm:$0xff]
                %793 = vst [vmem:[%s787 + $0x10] sm:$0xff] %v792
                %v794 = vld [vmem:[%s786 + $0x18] sm:$0xff]
                %795 = vst [vmem:[%s787 + $0x18] sm:$0xff] %v794
              $region82: #{custom-call.10} parent=76 // loop_footer
                %s785 = sadd.s32 1, %s781
              $region83: #{custom-call.10} parent=76 // loop_footer_branch
                %780 = sbr.rel target = $region79
              $region84: #{custom-call.10} parent=76 // loop_exit
                _
            $region77: #{custom-call.10} parent=61 // pred_fallthru
              _
            // Predicated region
            $region85: #{custom-call.10} parent=61 // pred_check
              _
            $region86: #{custom-call.10} parent=61 // pred_check_branch
              %797 = sbr.rel target = $region88
            $region87: #{custom-call.10} parent=61 // pred_region
              _
            $region88: #{custom-call.10} parent=61 // pred_fallthru
              _
          $region62: #{custom-call.10} parent=57 // pred_fallthru
            _
          // Predicated region
          $region63: #{custom-call.10} parent=57 // pred_check
            _
          $region64: #{custom-call.10} parent=57 // pred_check_branch
            %760 = sbr.rel target = $region66
          $region65: #{custom-call.10} parent=57 // pred_region
            loop: start=0, step=1, limit=1
            $region67: #{custom-call.10} parent=65 // loop_pre_header
              _
            $region68: #{custom-call.10} parent=65 // loop_header
              %s763 = sphi 0, %s767
              %p764 = scmp.ge.s32.totalorder %s763, 1
              %s768 = sphi %s747, %s747
              %s769 = sphi %s754, %s754
            $region69: #{custom-call.10} parent=65 // loop_header_branch
              %766 = sbr.rel (%p764) target = $region73
            $region70: #{custom-call.10} parent=65 // loop_body
              %v770 = vld [vmem:[%s768] sm:$0xff]
              %771 = vst [vmem:[%s769] sm:$0xff] %v770
              %v772 = vld [vmem:[%s768 + $0x8] sm:$0xff]
              %773 = vst [vmem:[%s769 + $0x8] sm:$0xff] %v772
              %v774 = vld [vmem:[%s768 + $0x10] sm:$0xff]
              %775 = vst [vmem:[%s769 + $0x10] sm:$0xff] %v774
              %v776 = vld [vmem:[%s768 + $0x18] sm:$0xff]
              %777 = vst [vmem:[%s769 + $0x18] sm:$0xff] %v776
            $region71: #{custom-call.10} parent=65 // loop_footer
              %s767 = sadd.s32 1, %s763
            $region72: #{custom-call.10} parent=65 // loop_footer_branch
              %762 = sbr.rel target = $region68
            $region73: #{custom-call.10} parent=65 // loop_exit
              _
          $region66: #{custom-call.10} parent=57 // pred_fallthru
            _
        $region58: #{custom-call.10} parent=53 // pred_fallthru
          _
        %798 = vnop
      $region54: #{custom-call.10} parent=5 // pred_fallthru
        _
      %p799 = scmp.le.s32.totalorder 2, %s3
      // Predicated region
      $region89: #{custom-call.10} parent=5 // pred_check
        %p800 = pneg %p799
      $region90: #{custom-call.10} parent=5 // pred_check_branch
        %802 = sbr.rel (%p800) target = $region92
      $region91: #{custom-call.10} parent=5 // pred_region
        %s803 = ssub.s32 %s3, 2
        %s804 = sand.u32 %s9, 1
        %s805 = sand.u32 %s9, 1
        %s806 = smul.addr %s805, 32
        %s807 = scalar_lea.vmem [#allocation1], %s806
      $region92: #{custom-call.10} parent=5 // pred_fallthru
        _
    $region6: #{custom-call.10} parent=1 // loop_footer
      %s7 = sadd.s32 1, %s3
    $region7: #{custom-call.10} parent=1 // loop_footer_branch
      %2 = sbr.rel target = $region3
    $region8: #{custom-call.10} parent=1 // loop_exit
      _

// kernel: custom-call.9
$region0: #{custom-call.9}
  %s0 = inlined_call_operand.vmem [shape: f32[4,1,32,32], index: 0, kind: input, shape index: {}]
  %s1 = inlined_call_operand.vmem [shape: f32[4,1,32,32], index: 1, kind: output, shape index: {}]
  $region1: #{custom-call.9} parent=0
    #allocation0 [shape = 'u8[32768]{0}', space=vmem, size = 0x8000, scoped, tag = 'operand span for operand 0']
    #allocation1 [shape = 'u8[32768]{0}', space=vmem, size = 0x8000, scoped, tag = 'operand span for operand 1']
    loop: start=0, step=1, limit=6
    $region2: #{custom-call.9} parent=1 // loop_pre_header
      _
    $region3: #{custom-call.9} parent=1 // loop_header
      %s3 = sphi 0, %s7
      %p4 = scmp.ge.s32.totalorder %s3, 6
      %s10 = sphi 0, %s36
      %s11 = sphi 0, %s32
      %s12 = sphi 0, %s28
      %s13 = sphi 0, %s24
      %s14 = sphi 0, %s10
      %s15 = sphi 0, %s11
      %s16 = sphi 0, %s12
      %s17 = sphi 0, %s13
      %s18 = sphi 0, %s14
      %s19 = sphi 0, %s15
      %s20 = sphi 0, %s16
      %s21 = sphi 0, %s17
    $region4: #{custom-call.9} parent=1 // loop_header_branch
      %6 = sbr.rel (%p4) target = $region8
    $region5: #{custom-call.9} parent=1 // loop_body
      %s8 = ssub.s32 %s3, 1
      %s9 = ssub.s32 %s3, 2
      %s22 = sadd.s32 1, %s13
      %p23 = scmp.ge.s32.totalorder %s22, 1
      %s24 = scalar_select %p23, 0, %s22
      %s25 = sadd.s32 1, %s12
      %s26 = scalar_select %p23, %s25, %s12
      %p27 = scmp.ge.s32.totalorder %s26, 1
      %s28 = scalar_select %p27, 0, %s26
      %s29 = sadd.s32 1, %s11
      %s30 = scalar_select %p27, %s29, %s11
      %p31 = scmp.ge.s32.totalorder %s30, 1
      %s32 = scalar_select %p31, 0, %s30
      %s33 = sadd.s32 1, %s10
      %s34 = scalar_select %p31, %s33, %s10
      %p35 = scmp.ge.s32.totalorder %s34, 4
      %s36 = scalar_select %p35, 0, %s34
      %p37 = scmp.le.s32.totalorder 1, %s3
      %p38 = scmp.lt.s32.totalorder %s3, 5
      %p39 = pnand %p37, %p38
      %p40 = pneg %p39
      // Predicated region
      $region9: #{custom-call.9} parent=5 // pred_check
        _
      $region10: #{custom-call.9} parent=5 // pred_check_branch
        %42 = sbr.rel (%p39) target = $region12
      $region11: #{custom-call.9} parent=5 // pred_region
        %s43 = ssub.s32 %s3, 1
      $region12: #{custom-call.9} parent=5 // pred_fallthru
        _
      %p44 = scmp.lt.s32.totalorder %s3, 4
      // Predicated region
      $region13: #{custom-call.9} parent=5 // pred_check
        %p45 = pneg %p44
      $region14: #{custom-call.9} parent=5 // pred_check_branch
        %47 = sbr.rel (%p45) target = $region16
      $region15: #{custom-call.9} parent=5 // pred_region
        %s48 = sand.u32 %s3, 1
        %s49 = sand.u32 %s3, 1
        %s50 = smul.addr %s49, 32
        %s51 = scalar_lea.vmem [#allocation0], %s50
        %s52 = sadd.s32 %s13, %s12
        %s53 = smul.addr %s11, 4
        %s54 = sadd.s32 %s52, %s53
        %s55 = smul.addr %s10, 4
        %s56 = sadd.s32 %s54, %s55
        %s57 = smul.addr %s56, 8
        %s58 = scalar_lea.vmem %s0, %s57
        // Predicated region
        $region17: #{custom-call.9} parent=15 // pred_check
          _
        $region18: #{custom-call.9} parent=15 // pred_check_branch
          %60 = sbr.rel (0) target = $region20
        $region19: #{custom-call.9} parent=15 // pred_region
          // Predicated region
          $region21: #{custom-call.9} parent=19 // pred_check
            _
          $region22: #{custom-call.9} parent=19 // pred_check_branch
            %62 = sbr.rel (0) target = $region24
          $region23: #{custom-call.9} parent=19 // pred_region
            // Predicated region
            $region36: #{custom-call.9} parent=23 // pred_check
              _
            $region37: #{custom-call.9} parent=23 // pred_check_branch
              %83 = sbr.rel (0) target = $region39
            $region38: #{custom-call.9} parent=23 // pred_region
              loop: start=0, step=1, limit=1
              $region40: #{custom-call.9} parent=38 // loop_pre_header
                _
              $region41: #{custom-call.9} parent=38 // loop_header
                %s85 = sphi 0, %s89
                %p86 = scmp.ge.s32.totalorder %s85, 1
                %s90 = sphi %s58, %s58
                %s91 = sphi %s51, %s51
              $region42: #{custom-call.9} parent=38 // loop_header_branch
                %88 = sbr.rel (%p86) target = $region46
              $region43: #{custom-call.9} parent=38 // loop_body
                %v92 = vld [vmem:[%s90] sm:$0xff]
                %93 = vst [vmem:[%s91] sm:$0xff] %v92
                %v94 = vld [vmem:[%s90 + $0x8] sm:$0xff]
                %95 = vst [vmem:[%s91 + $0x8] sm:$0xff] %v94
                %v96 = vld [vmem:[%s90 + $0x10] sm:$0xff]
                %97 = vst [vmem:[%s91 + $0x10] sm:$0xff] %v96
                %v98 = vld [vmem:[%s90 + $0x18] sm:$0xff]
                %99 = vst [vmem:[%s91 + $0x18] sm:$0xff] %v98
              $region44: #{custom-call.9} parent=38 // loop_footer
                %s89 = sadd.s32 1, %s85
              $region45: #{custom-call.9} parent=38 // loop_footer_branch
                %84 = sbr.rel target = $region41
              $region46: #{custom-call.9} parent=38 // loop_exit
                _
            $region39: #{custom-call.9} parent=23 // pred_fallthru
              _
            // Predicated region
            $region47: #{custom-call.9} parent=23 // pred_check
              _
            $region48: #{custom-call.9} parent=23 // pred_check_branch
              %101 = sbr.rel target = $region50
            $region49: #{custom-call.9} parent=23 // pred_region
              _
            $region50: #{custom-call.9} parent=23 // pred_fallthru
              _
          $region24: #{custom-call.9} parent=19 // pred_fallthru
            _
          // Predicated region
          $region25: #{custom-call.9} parent=19 // pred_check
            _
          $region26: #{custom-call.9} parent=19 // pred_check_branch
            %64 = sbr.rel target = $region28
          $region27: #{custom-call.9} parent=19 // pred_region
            loop: start=0, step=1, limit=1
            $region29: #{custom-call.9} parent=27 // loop_pre_header
              _
            $region30: #{custom-call.9} parent=27 // loop_header
              %s67 = sphi 0, %s71
              %p68 = scmp.ge.s32.totalorder %s67, 1
              %s72 = sphi %s58, %s58
              %s73 = sphi %s51, %s51
            $region31: #{custom-call.9} parent=27 // loop_header_branch
              %70 = sbr.rel (%p68) target = $region35
            $region32: #{custom-call.9} parent=27 // loop_body
              %v74 = vld [vmem:[%s72] sm:$0xff]
              %75 = vst [vmem:[%s73] sm:$0xff] %v74
              %v76 = vld [vmem:[%s72 + $0x8] sm:$0xff]
              %77 = vst [vmem:[%s73 + $0x8] sm:$0xff] %v76
              %v78 = vld [vmem:[%s72 + $0x10] sm:$0xff]
              %79 = vst [vmem:[%s73 + $0x10] sm:$0xff] %v78
              %v80 = vld [vmem:[%s72 + $0x18] sm:$0xff]
              %81 = vst [vmem:[%s73 + $0x18] sm:$0xff] %v80
            $region33: #{custom-call.9} parent=27 // loop_footer
              %s71 = sadd.s32 1, %s67
            $region34: #{custom-call.9} parent=27 // loop_footer_branch
              %66 = sbr.rel target = $region30
            $region35: #{custom-call.9} parent=27 // loop_exit
              _
          $region28: #{custom-call.9} parent=19 // pred_fallthru
            _
        $region20: #{custom-call.9} parent=15 // pred_fallthru
          _
        %102 = vnop
      $region16: #{custom-call.9} parent=5 // pred_fallthru
        _
      %p103 = scmp.le.s32.totalorder 1, %s3
      %p104 = scmp.lt.s32.totalorder %s3, 5
      %p105 = pnand %p103, %p104
      %p106 = pneg %p105
      // Predicated region
      $region51: #{custom-call.9} parent=5 // pred_check
        _
      $region52: #{custom-call.9} parent=5 // pred_check_branch
        %108 = sbr.rel (%p105) target = $region54
      $region53: #{custom-call.9} parent=5 // pred_region
        #allocation2 [shape = 'f32[32,32]{1,0}', space=vmem, size = 0x4000, scoped, tag = 'rescaled input a']
        %s109 = ssub.s32 %s3, 1
        %s110 = sand.u32 %s8, 1
        %s111 = sand.u32 %s8, 1
        %s112 = smul.addr %s111, 32
        %s113 = scalar_lea.vmem [#allocation0], %s112
        %s114 = sand.u32 %s8, 1
        %s115 = sand.u32 %s8, 1
        %s116 = smul.addr %s115, 32
        %s117 = scalar_lea.vmem [#allocation0], %s116
        %s118 = sand.u32 %s8, 1
        %s119 = sand.u32 %s8, 1
        %s120 = smul.addr %s119, 32
        %s121 = scalar_lea.vmem [#allocation1], %s120
        %v122 = vlaneseq
        %v123 = vand.u32 %v122, 127
        %vm124 = vcmp.lt.s32.totalorder %v123, 32
        %v125 = vlaneseq
        %v126 = vshrl.u32 %v125, 7
        %vm128 = vcmp.eq.s32.totalorder %v126, %v123
        %v129 = vld [vmem:[%s113] sm:$0xff]
        %v130 = vsel %vm128, %v129, 0.0
        %131 = vadd.xlane.f32.xlu0 %v130
        %v132 = vpop.xlane.xlu0 %131
        %vm133 = vcmp.le.s32.totalorder %v126, %v123
        %vm134 = vmand %vm133, %vm124
        %v135 = vsel %vm134, %v129, 0.0
        %v136 = vrcp.pop %v132
        %v137 = vmul.f32 %v135, %v136
        %138 = vst [vmem:[#allocation2] sm:$0xff] %v137
        %s139 = scalar_lea.vmem %s113, 8 [#allocation0]
        %s140 = scalar_lea.vmem [#allocation2], 8
        %v141 = vlaneseq
        %v142 = vshrl.u32 %v141, 7
        %v143 = vadd.s32 %v142, 8
        %vm144 = vcmp.eq.s32.totalorder %v143, %v123
        %v145 = vld [vmem:[%s139] sm:$0xff]
        %v146 = vsel %vm144, %v145, 0.0
        %147 = vadd.xlane.f32.xlu0 %v146
        %v148 = vpop.xlane.xlu0 %147
        %vm149 = vcmp.le.s32.totalorder %v143, %v123
        %vm150 = vmand %vm149, %vm124
        %v151 = vsel %vm150, %v145, 0.0
        %v152 = vrcp.pop %v148
        %v153 = vmul.f32 %v151, %v152
        %154 = vst [vmem:[%s140] sm:$0xff] %v153
        %s155 = scalar_lea.vmem %s113, 16 [#allocation0]
        %s156 = scalar_lea.vmem [#allocation2], 16
        %v157 = vlaneseq
        %v158 = vshrl.u32 %v157, 7
        %v159 = vadd.s32 %v158, 16
        %vm160 = vcmp.eq.s32.totalorder %v159, %v123
        %v161 = vld [vmem:[%s155] sm:$0xff]
        %v162 = vsel %vm160, %v161, 0.0
        %163 = vadd.xlane.f32.xlu0 %v162
        %v164 = vpop.xlane.xlu0 %163
        %vm165 = vcmp.le.s32.totalorder %v159, %v123
        %vm166 = vmand %vm165, %vm124
        %v167 = vsel %vm166, %v161, 0.0
        %v168 = vrcp.pop %v164
        %v169 = vmul.f32 %v167, %v168
        %170 = vst [vmem:[%s156] sm:$0xff] %v169
        %s171 = scalar_lea.vmem %s113, 24 [#allocation0]
        %s172 = scalar_lea.vmem [#allocation2], 24
        %v173 = vlaneseq
        %v174 = vshrl.u32 %v173, 7
        %v175 = vadd.s32 %v174, 24
        %vm176 = vcmp.eq.s32.totalorder %v175, %v123
        %v177 = vld [vmem:[%s171] sm:$0xff]
        %v178 = vsel %vm176, %v177, 0.0
        %179 = vadd.xlane.f32.xlu0 %v178
        %v180 = vpop.xlane.xlu0 %179
        %vm181 = vcmp.le.s32.totalorder %v175, %v123
        %vm182 = vmand %vm181, %vm124
        %v183 = vsel %vm182, %v177, 0.0
        %v184 = vrcp.pop %v180
        %v185 = vmul.f32 %v183, %v184
        %186 = vst [vmem:[%s172] sm:$0xff] %v185
        %v187 = vlaneseq
        %v188 = vand.u32 %v187, 127
        %v189 = vlaneseq
        %v190 = vshrl.u32 %v189, 7
        %vm192 = vcmp.eq.s32.totalorder %v188, %v190
        %v193 = vsel %vm192, -1.0, 0.0
        %v194 = vlaneseq
        %v195 = vand.u32 %v194, 127
        %v196 = vlaneseq
        %v197 = vshrl.u32 %v196, 7
        %v198 = vadd.s32 %v197, 8
        %vm199 = vcmp.eq.s32.totalorder %v195, %v198
        %v200 = vsel %vm199, -1.0, 0.0
        %v201 = vlaneseq
        %v202 = vand.u32 %v201, 127
        %v203 = vlaneseq
        %v204 = vshrl.u32 %v203, 7
        %v205 = vadd.s32 %v204, 16
        %vm206 = vcmp.eq.s32.totalorder %v202, %v205
        %v207 = vsel %vm206, -1.0, 0.0
        %v208 = vlaneseq
        %v209 = vand.u32 %v208, 127
        %v210 = vlaneseq
        %v211 = vshrl.u32 %v210, 7
        %v212 = vadd.s32 %v211, 24
        %vm213 = vcmp.eq.s32.totalorder %v209, %v212
        %v214 = vlaneseq
        %v215 = vand.u32 %v214, 127
        %vm216 = vcmp.eq.s32.totalorder %v215, 31
        %v217 = vsel %vm216, 1.0, -1.0
        %v218 = vsel %vm213, %v217, 0.0
        %s219 = scalar_lea.vmem [#allocation2], 30
        %v220 = vld [vmem:[%s219] ss:$0 sm:$0xff]
        %v221 = vxor.u32 %v220, 2147483648
        %v222 = vlaneseq
        %v223 = vand.u32 %v222, 127
        %vm224 = vcmp.eq.s32.totalorder %v223, 30
        %v225 = vmul.f32 %v221, %v218
        %226 = vadd.xlane.f32.xlu0 %v225
        %v227 = vpop.xlane.xlu0 %226
        %v228 = vsel %vm224, %v227, %v218
        %s229 = scalar_lea.vmem [#allocation2], 29
        %v230 = vld [vmem:[%s229] ss:$0 sm:$0xff]
        %v231 = vxor.u32 %v230, 2147483648
        %v232 = vlaneseq
        %v233 = vand.u32 %v232, 127
        %vm234 = vcmp.eq.s32.totalorder %v233, 29
        %v235 = vmul.f32 %v231, %v228
        %236 = vadd.xlane.f32.xlu0 %v235
        %v237 = vpop.xlane.xlu0 %236
        %v238 = vsel %vm234, %v237, %v228
        %s239 = scalar_lea.vmem [#allocation2], 28
        %v240 = vld [vmem:[%s239] ss:$0 sm:$0xff]
        %v241 = vxor.u32 %v240, 2147483648
        %v242 = vlaneseq
        %v243 = vand.u32 %v242, 127
        %vm244 = vcmp.eq.s32.totalorder %v243, 28
        %v245 = vmul.f32 %v241, %v238
        %246 = vadd.xlane.f32.xlu0 %v245
        %v247 = vpop.xlane.xlu0 %246
        %v248 = vsel %vm244, %v247, %v238
        %s249 = scalar_lea.vmem [#allocation2], 27
        %v250 = vld [vmem:[%s249] ss:$0 sm:$0xff]
        %v251 = vxor.u32 %v250, 2147483648
        %v252 = vlaneseq
        %v253 = vand.u32 %v252, 127
        %vm254 = vcmp.eq.s32.totalorder %v253, 27
        %v255 = vmul.f32 %v251, %v248
        %256 = vadd.xlane.f32.xlu0 %v255
        %v257 = vpop.xlane.xlu0 %256
        %v258 = vsel %vm254, %v257, %v248
        %s259 = scalar_lea.vmem [#allocation2], 26
        %v260 = vld [vmem:[%s259] ss:$0 sm:$0xff]
        %v261 = vxor.u32 %v260, 2147483648
        %v262 = vlaneseq
        %v263 = vand.u32 %v262, 127
        %vm264 = vcmp.eq.s32.totalorder %v263, 26
        %v265 = vmul.f32 %v261, %v258
        %266 = vadd.xlane.f32.xlu0 %v265
        %v267 = vpop.xlane.xlu0 %266
        %v268 = vsel %vm264, %v267, %v258
        %s269 = scalar_lea.vmem [#allocation2], 25
        %v270 = vld [vmem:[%s269] ss:$0 sm:$0xff]
        %v271 = vxor.u32 %v270, 2147483648
        %v272 = vlaneseq
        %v273 = vand.u32 %v272, 127
        %vm274 = vcmp.eq.s32.totalorder %v273, 25
        %v275 = vmul.f32 %v271, %v268
        %276 = vadd.xlane.f32.xlu0 %v275
        %v277 = vpop.xlane.xlu0 %276
        %v278 = vsel %vm274, %v277, %v268
        %s279 = scalar_lea.vmem [#allocation2], 24
        %v280 = vld [vmem:[%s279] ss:$0 sm:$0xff]
        %v281 = vxor.u32 %v280, 2147483648
        %v282 = vlaneseq
        %v283 = vand.u32 %v282, 127
        %vm284 = vcmp.eq.s32.totalorder %v283, 24
        %v285 = vmul.f32 %v281, %v278
        %286 = vadd.xlane.f32.xlu0 %v285
        %v287 = vpop.xlane.xlu0 %286
        %v288 = vsel %vm284, %v287, %v278
        %s289 = scalar_lea.vmem [#allocation2], 23
        %v290 = vld [vmem:[%s289] ss:$0 sm:$0xff]
        %v291 = vxor.u32 %v290, 2147483648
        %v292 = vlaneseq
        %v293 = vand.u32 %v292, 127
        %vm294 = vcmp.eq.s32.totalorder %v293, 23
        %v295 = vmul.f32 %v291, %v207
        %296 = vadd.xlane.f32.xlu0 %v295
        %v297 = vpop.xlane.xlu0 %296
        %v298 = vsel %vm294, %v297, %v207
        %v299 = vmul.f32 %v291, %v288
        %300 = vadd.xlane.f32.xlu0 %v299
        %v301 = vpop.xlane.xlu0 %300
        %v302 = vsel %vm294, %v301, %v288
        %s303 = scalar_lea.vmem [#allocation2], 22
        %v304 = vld [vmem:[%s303] ss:$0 sm:$0xff]
        %v305 = vxor.u32 %v304, 2147483648
        %v306 = vlaneseq
        %v307 = vand.u32 %v306, 127
        %vm308 = vcmp.eq.s32.totalorder %v307, 22
        %v309 = vmul.f32 %v305, %v298
        %310 = vadd.xlane.f32.xlu0 %v309
        %v311 = vpop.xlane.xlu0 %310
        %v312 = vsel %vm308, %v311, %v298
        %v313 = vmul.f32 %v305, %v302
        %314 = vadd.xlane.f32.xlu0 %v313
        %v315 = vpop.xlane.xlu0 %314
        %v316 = vsel %vm308, %v315, %v302
        %s317 = scalar_lea.vmem [#allocation2], 21
        %v318 = vld [vmem:[%s317] ss:$0 sm:$0xff]
        %v319 = vxor.u32 %v318, 2147483648
        %v320 = vlaneseq
        %v321 = vand.u32 %v320, 127
        %vm322 = vcmp.eq.s32.totalorder %v321, 21
        %v323 = vmul.f32 %v319, %v312
        %324 = vadd.xlane.f32.xlu0 %v323
        %v325 = vpop.xlane.xlu0 %324
        %v326 = vsel %vm322, %v325, %v312
        %v327 = vmul.f32 %v319, %v316
        %328 = vadd.xlane.f32.xlu0 %v327
        %v329 = vpop.xlane.xlu0 %328
        %v330 = vsel %vm322, %v329, %v316
        %s331 = scalar_lea.vmem [#allocation2], 20
        %v332 = vld [vmem:[%s331] ss:$0 sm:$0xff]
        %v333 = vxor.u32 %v332, 2147483648
        %v334 = vlaneseq
        %v335 = vand.u32 %v334, 127
        %vm336 = vcmp.eq.s32.totalorder %v335, 20
        %v337 = vmul.f32 %v333, %v326
        %338 = vadd.xlane.f32.xlu0 %v337
        %v339 = vpop.xlane.xlu0 %338
        %v340 = vsel %vm336, %v339, %v326
        %v341 = vmul.f32 %v333, %v330
        %342 = vadd.xlane.f32.xlu0 %v341
        %v343 = vpop.xlane.xlu0 %342
        %v344 = vsel %vm336, %v343, %v330
        %s345 = scalar_lea.vmem [#allocation2], 19
        %v346 = vld [vmem:[%s345] ss:$0 sm:$0xff]
        %v347 = vxor.u32 %v346, 2147483648
        %v348 = vlaneseq
        %v349 = vand.u32 %v348, 127
        %vm350 = vcmp.eq.s32.totalorder %v349, 19
        %v351 = vmul.f32 %v347, %v340
        %352 = vadd.xlane.f32.xlu0 %v351
        %v353 = vpop.xlane.xlu0 %352
        %v354 = vsel %vm350, %v353, %v340
        %v355 = vmul.f32 %v347, %v344
        %356 = vadd.xlane.f32.xlu0 %v355
        %v357 = vpop.xlane.xlu0 %356
        %v358 = vsel %vm350, %v357, %v344
        %s359 = scalar_lea.vmem [#allocation2], 18
        %v360 = vld [vmem:[%s359] ss:$0 sm:$0xff]
        %v361 = vxor.u32 %v360, 2147483648
        %v362 = vlaneseq
        %v363 = vand.u32 %v362, 127
        %vm364 = vcmp.eq.s32.totalorder %v363, 18
        %v365 = vmul.f32 %v361, %v354
        %366 = vadd.xlane.f32.xlu0 %v365
        %v367 = vpop.xlane.xlu0 %366
        %v368 = vsel %vm364, %v367, %v354
        %v369 = vmul.f32 %v361, %v358
        %370 = vadd.xlane.f32.xlu0 %v369
        %v371 = vpop.xlane.xlu0 %370
        %v372 = vsel %vm364, %v371, %v358
        %s373 = scalar_lea.vmem [#allocation2], 17
        %v374 = vld [vmem:[%s373] ss:$0 sm:$0xff]
        %v375 = vxor.u32 %v374, 2147483648
        %v376 = vlaneseq
        %v377 = vand.u32 %v376, 127
        %vm378 = vcmp.eq.s32.totalorder %v377, 17
        %v379 = vmul.f32 %v375, %v368
        %380 = vadd.xlane.f32.xlu0 %v379
        %v381 = vpop.xlane.xlu0 %380
        %v382 = vsel %vm378, %v381, %v368
        %v383 = vmul.f32 %v375, %v372
        %384 = vadd.xlane.f32.xlu0 %v383
        %v385 = vpop.xlane.xlu0 %384
        %v386 = vsel %vm378, %v385, %v372
        %s387 = scalar_lea.vmem [#allocation2], 16
        %v388 = vld [vmem:[%s387] ss:$0 sm:$0xff]
        %v389 = vxor.u32 %v388, 2147483648
        %v390 = vlaneseq
        %v391 = vand.u32 %v390, 127
        %vm392 = vcmp.eq.s32.totalorder %v391, 16
        %v393 = vmul.f32 %v389, %v382
        %394 = vadd.xlane.f32.xlu0 %v393
        %v395 = vpop.xlane.xlu0 %394
        %v396 = vsel %vm392, %v395, %v382
        %v397 = vmul.f32 %v389, %v386
        %398 = vadd.xlane.f32.xlu0 %v397
        %v399 = vpop.xlane.xlu0 %398
        %v400 = vsel %vm392, %v399, %v386
        %s401 = scalar_lea.vmem [#allocation2], 15
        %v402 = vld [vmem:[%s401] ss:$0 sm:$0xff]
        %v403 = vxor.u32 %v402, 2147483648
        %v404 = vlaneseq
        %v405 = vand.u32 %v404, 127
        %vm406 = vcmp.eq.s32.totalorder %v405, 15
        %v407 = vmul.f32 %v403, %v200
        %408 = vadd.xlane.f32.xlu0 %v407
        %v409 = vpop.xlane.xlu0 %408
        %v410 = vsel %vm406, %v409, %v200
        %v411 = vmul.f32 %v403, %v396
        %412 = vadd.xlane.f32.xlu0 %v411
        %v413 = vpop.xlane.xlu0 %412
        %v414 = vsel %vm406, %v413, %v396
        %v415 = vmul.f32 %v403, %v400
        %416 = vadd.xlane.f32.xlu0 %v415
        %v417 = vpop.xlane.xlu0 %416
        %v418 = vsel %vm406, %v417, %v400
        %s419 = scalar_lea.vmem [#allocation2], 14
        %v420 = vld [vmem:[%s419] ss:$0 sm:$0xff]
        %v421 = vxor.u32 %v420, 2147483648
        %v422 = vlaneseq
        %v423 = vand.u32 %v422, 127
        %vm424 = vcmp.eq.s32.totalorder %v423, 14
        %v425 = vmul.f32 %v421, %v410
        %426 = vadd.xlane.f32.xlu0 %v425
        %v427 = vpop.xlane.xlu0 %426
        %v428 = vsel %vm424, %v427, %v410
        %v429 = vmul.f32 %v421, %v414
        %430 = vadd.xlane.f32.xlu0 %v429
        %v431 = vpop.xlane.xlu0 %430
        %v432 = vsel %vm424, %v431, %v414
        %v433 = vmul.f32 %v421, %v418
        %434 = vadd.xlane.f32.xlu0 %v433
        %v435 = vpop.xlane.xlu0 %434
        %v436 = vsel %vm424, %v435, %v418
        %s437 = scalar_lea.vmem [#allocation2], 13
        %v438 = vld [vmem:[%s437] ss:$0 sm:$0xff]
        %v439 = vxor.u32 %v438, 2147483648
        %v440 = vlaneseq
        %v441 = vand.u32 %v440, 127
        %vm442 = vcmp.eq.s32.totalorder %v441, 13
        %v443 = vmul.f32 %v439, %v428
        %444 = vadd.xlane.f32.xlu0 %v443
        %v445 = vpop.xlane.xlu0 %444
        %v446 = vsel %vm442, %v445, %v428
        %v447 = vmul.f32 %v439, %v432
        %448 = vadd.xlane.f32.xlu0 %v447
        %v449 = vpop.xlane.xlu0 %448
        %v450 = vsel %vm442, %v449, %v432
        %v451 = vmul.f32 %v439, %v436
        %452 = vadd.xlane.f32.xlu0 %v451
        %v453 = vpop.xlane.xlu0 %452
        %v454 = vsel %vm442, %v453, %v436
        %s455 = scalar_lea.vmem [#allocation2], 12
        %v456 = vld [vmem:[%s455] ss:$0 sm:$0xff]
        %v457 = vxor.u32 %v456, 2147483648
        %v458 = vlaneseq
        %v459 = vand.u32 %v458, 127
        %vm460 = vcmp.eq.s32.totalorder %v459, 12
        %v461 = vmul.f32 %v457, %v446
        %462 = vadd.xlane.f32.xlu0 %v461
        %v463 = vpop.xlane.xlu0 %462
        %v464 = vsel %vm460, %v463, %v446
        %v465 = vmul.f32 %v457, %v450
        %466 = vadd.xlane.f32.xlu0 %v465
        %v467 = vpop.xlane.xlu0 %466
        %v468 = vsel %vm460, %v467, %v450
        %v469 = vmul.f32 %v457, %v454
        %470 = vadd.xlane.f32.xlu0 %v469
        %v471 = vpop.xlane.xlu0 %470
        %v472 = vsel %vm460, %v471, %v454
        %s473 = scalar_lea.vmem [#allocation2], 11
        %v474 = vld [vmem:[%s473] ss:$0 sm:$0xff]
        %v475 = vxor.u32 %v474, 2147483648
        %v476 = vlaneseq
        %v477 = vand.u32 %v476, 127
        %vm478 = vcmp.eq.s32.totalorder %v477, 11
        %v479 = vmul.f32 %v475, %v464
        %480 = vadd.xlane.f32.xlu0 %v479
        %v481 = vpop.xlane.xlu0 %480
        %v482 = vsel %vm478, %v481, %v464
        %v483 = vmul.f32 %v475, %v468
        %484 = vadd.xlane.f32.xlu0 %v483
        %v485 = vpop.xlane.xlu0 %484
        %v486 = vsel %vm478, %v485, %v468
        %v487 = vmul.f32 %v475, %v472
        %488 = vadd.xlane.f32.xlu0 %v487
        %v489 = vpop.xlane.xlu0 %488
        %v490 = vsel %vm478, %v489, %v472
        %s491 = scalar_lea.vmem [#allocation2], 10
        %v492 = vld [vmem:[%s491] ss:$0 sm:$0xff]
        %v493 = vxor.u32 %v492, 2147483648
        %v494 = vlaneseq
        %v495 = vand.u32 %v494, 127
        %vm496 = vcmp.eq.s32.totalorder %v495, 10
        %v497 = vmul.f32 %v493, %v482
        %498 = vadd.xlane.f32.xlu0 %v497
        %v499 = vpop.xlane.xlu0 %498
        %v500 = vsel %vm496, %v499, %v482
        %v501 = vmul.f32 %v493, %v486
        %502 = vadd.xlane.f32.xlu0 %v501
        %v503 = vpop.xlane.xlu0 %502
        %v504 = vsel %vm496, %v503, %v486
        %v505 = vmul.f32 %v493, %v490
        %506 = vadd.xlane.f32.xlu0 %v505
        %v507 = vpop.xlane.xlu0 %506
        %v508 = vsel %vm496, %v507, %v490
        %s509 = scalar_lea.vmem [#allocation2], 9
        %v510 = vld [vmem:[%s509] ss:$0 sm:$0xff]
        %v511 = vxor.u32 %v510, 2147483648
        %v512 = vlaneseq
        %v513 = vand.u32 %v512, 127
        %vm514 = vcmp.eq.s32.totalorder %v513, 9
        %v515 = vmul.f32 %v511, %v500
        %516 = vadd.xlane.f32.xlu0 %v515
        %v517 = vpop.xlane.xlu0 %516
        %v518 = vsel %vm514, %v517, %v500
        %v519 = vmul.f32 %v511, %v504
        %520 = vadd.xlane.f32.xlu0 %v519
        %v521 = vpop.xlane.xlu0 %520
        %v522 = vsel %vm514, %v521, %v504
        %v523 = vmul.f32 %v511, %v508
        %524 = vadd.xlane.f32.xlu0 %v523
        %v525 = vpop.xlane.xlu0 %524
        %v526 = vsel %vm514, %v525, %v508
        %s527 = scalar_lea.vmem [#allocation2], 8
        %v528 = vld [vmem:[%s527] ss:$0 sm:$0xff]
        %v529 = vxor.u32 %v528, 2147483648
        %v530 = vlaneseq
        %v531 = vand.u32 %v530, 127
        %vm532 = vcmp.eq.s32.totalorder %v531, 8
        %v533 = vmul.f32 %v529, %v518
        %534 = vadd.xlane.f32.xlu0 %v533
        %v535 = vpop.xlane.xlu0 %534
        %v536 = vsel %vm532, %v535, %v518
        %v537 = vmul.f32 %v529, %v522
        %538 = vadd.xlane.f32.xlu0 %v537
        %v539 = vpop.xlane.xlu0 %538
        %v540 = vsel %vm532, %v539, %v522
        %v541 = vmul.f32 %v529, %v526
        %542 = vadd.xlane.f32.xlu0 %v541
        %v543 = vpop.xlane.xlu0 %542
        %v544 = vsel %vm532, %v543, %v526
        %s545 = scalar_lea.vmem [#allocation2], 7
        %v546 = vld [vmem:[%s545] ss:$0 sm:$0xff]
        %v547 = vxor.u32 %v546, 2147483648
        %v548 = vlaneseq
        %v549 = vand.u32 %v548, 127
        %vm550 = vcmp.eq.s32.totalorder %v549, 7
        %v551 = vmul.f32 %v547, %v193
        %552 = vadd.xlane.f32.xlu0 %v551
        %v553 = vpop.xlane.xlu0 %552
        %v554 = vsel %vm550, %v553, %v193
        %v555 = vmul.f32 %v547, %v536
        %556 = vadd.xlane.f32.xlu0 %v555
        %v557 = vpop.xlane.xlu0 %556
        %v558 = vsel %vm550, %v557, %v536
        %v559 = vmul.f32 %v547, %v540
        %560 = vadd.xlane.f32.xlu0 %v559
        %v561 = vpop.xlane.xlu0 %560
        %v562 = vsel %vm550, %v561, %v540
        %v563 = vmul.f32 %v547, %v544
        %564 = vadd.xlane.f32.xlu0 %v563
        %v565 = vpop.xlane.xlu0 %564
        %v566 = vsel %vm550, %v565, %v544
        %s567 = scalar_lea.vmem [#allocation2], 6
        %v568 = vld [vmem:[%s567] ss:$0 sm:$0xff]
        %v569 = vxor.u32 %v568, 2147483648
        %v570 = vlaneseq
        %v571 = vand.u32 %v570, 127
        %vm572 = vcmp.eq.s32.totalorder %v571, 6
        %v573 = vmul.f32 %v569, %v554
        %574 = vadd.xlane.f32.xlu0 %v573
        %v575 = vpop.xlane.xlu0 %574
        %v576 = vsel %vm572, %v575, %v554
        %v577 = vmul.f32 %v569, %v558
        %578 = vadd.xlane.f32.xlu0 %v577
        %v579 = vpop.xlane.xlu0 %578
        %v580 = vsel %vm572, %v579, %v558
        %v581 = vmul.f32 %v569, %v562
        %582 = vadd.xlane.f32.xlu0 %v581
        %v583 = vpop.xlane.xlu0 %582
        %v584 = vsel %vm572, %v583, %v562
        %v585 = vmul.f32 %v569, %v566
        %586 = vadd.xlane.f32.xlu0 %v585
        %v587 = vpop.xlane.xlu0 %586
        %v588 = vsel %vm572, %v587, %v566
        %s589 = scalar_lea.vmem [#allocation2], 5
        %v590 = vld [vmem:[%s589] ss:$0 sm:$0xff]
        %v591 = vxor.u32 %v590, 2147483648
        %v592 = vlaneseq
        %v593 = vand.u32 %v592, 127
        %vm594 = vcmp.eq.s32.totalorder %v593, 5
        %v595 = vmul.f32 %v591, %v576
        %596 = vadd.xlane.f32.xlu0 %v595
        %v597 = vpop.xlane.xlu0 %596
        %v598 = vsel %vm594, %v597, %v576
        %v599 = vmul.f32 %v591, %v580
        %600 = vadd.xlane.f32.xlu0 %v599
        %v601 = vpop.xlane.xlu0 %600
        %v602 = vsel %vm594, %v601, %v580
        %v603 = vmul.f32 %v591, %v584
        %604 = vadd.xlane.f32.xlu0 %v603
        %v605 = vpop.xlane.xlu0 %604
        %v606 = vsel %vm594, %v605, %v584
        %v607 = vmul.f32 %v591, %v588
        %608 = vadd.xlane.f32.xlu0 %v607
        %v609 = vpop.xlane.xlu0 %608
        %v610 = vsel %vm594, %v609, %v588
        %s611 = scalar_lea.vmem [#allocation2], 4
        %v612 = vld [vmem:[%s611] ss:$0 sm:$0xff]
        %v613 = vxor.u32 %v612, 2147483648
        %v614 = vlaneseq
        %v615 = vand.u32 %v614, 127
        %vm616 = vcmp.eq.s32.totalorder %v615, 4
        %v617 = vmul.f32 %v613, %v598
        %618 = vadd.xlane.f32.xlu0 %v617
        %v619 = vpop.xlane.xlu0 %618
        %v620 = vsel %vm616, %v619, %v598
        %v621 = vmul.f32 %v613, %v602
        %622 = vadd.xlane.f32.xlu0 %v621
        %v623 = vpop.xlane.xlu0 %622
        %v624 = vsel %vm616, %v623, %v602
        %v625 = vmul.f32 %v613, %v606
        %626 = vadd.xlane.f32.xlu0 %v625
        %v627 = vpop.xlane.xlu0 %626
        %v628 = vsel %vm616, %v627, %v606
        %v629 = vmul.f32 %v613, %v610
        %630 = vadd.xlane.f32.xlu0 %v629
        %v631 = vpop.xlane.xlu0 %630
        %v632 = vsel %vm616, %v631, %v610
        %s633 = scalar_lea.vmem [#allocation2], 3
        %v634 = vld [vmem:[%s633] ss:$0 sm:$0xff]
        %v635 = vxor.u32 %v634, 2147483648
        %v636 = vlaneseq
        %v637 = vand.u32 %v636, 127
        %vm638 = vcmp.eq.s32.totalorder %v637, 3
        %v639 = vmul.f32 %v635, %v620
        %640 = vadd.xlane.f32.xlu0 %v639
        %v641 = vpop.xlane.xlu0 %640
        %v642 = vsel %vm638, %v641, %v620
        %v643 = vmul.f32 %v635, %v624
        %644 = vadd.xlane.f32.xlu0 %v643
        %v645 = vpop.xlane.xlu0 %644
        %v646 = vsel %vm638, %v645, %v624
        %v647 = vmul.f32 %v635, %v628
        %648 = vadd.xlane.f32.xlu0 %v647
        %v649 = vpop.xlane.xlu0 %648
        %v650 = vsel %vm638, %v649, %v628
        %v651 = vmul.f32 %v635, %v632
        %652 = vadd.xlane.f32.xlu0 %v651
        %v653 = vpop.xlane.xlu0 %652
        %v654 = vsel %vm638, %v653, %v632
        %s655 = scalar_lea.vmem [#allocation2], 2
        %v656 = vld [vmem:[%s655] ss:$0 sm:$0xff]
        %v657 = vxor.u32 %v656, 2147483648
        %v658 = vlaneseq
        %v659 = vand.u32 %v658, 127
        %vm660 = vcmp.eq.s32.totalorder %v659, 2
        %v661 = vmul.f32 %v657, %v642
        %662 = vadd.xlane.f32.xlu0 %v661
        %v663 = vpop.xlane.xlu0 %662
        %v664 = vsel %vm660, %v663, %v642
        %v665 = vmul.f32 %v657, %v646
        %666 = vadd.xlane.f32.xlu0 %v665
        %v667 = vpop.xlane.xlu0 %666
        %v668 = vsel %vm660, %v667, %v646
        %v669 = vmul.f32 %v657, %v650
        %670 = vadd.xlane.f32.xlu0 %v669
        %v671 = vpop.xlane.xlu0 %670
        %v672 = vsel %vm660, %v671, %v650
        %v673 = vmul.f32 %v657, %v654
        %674 = vadd.xlane.f32.xlu0 %v673
        %v675 = vpop.xlane.xlu0 %674
        %v676 = vsel %vm660, %v675, %v654
        %s677 = scalar_lea.vmem [#allocation2], 1
        %v678 = vld [vmem:[%s677] ss:$0 sm:$0xff]
        %v679 = vxor.u32 %v678, 2147483648
        %v680 = vlaneseq
        %v681 = vand.u32 %v680, 127
        %vm682 = vcmp.eq.s32.totalorder %v681, 1
        %v683 = vmul.f32 %v679, %v664
        %684 = vadd.xlane.f32.xlu0 %v683
        %v685 = vpop.xlane.xlu0 %684
        %v686 = vsel %vm682, %v685, %v664
        %v687 = vmul.f32 %v679, %v668
        %688 = vadd.xlane.f32.xlu0 %v687
        %v689 = vpop.xlane.xlu0 %688
        %v690 = vsel %vm682, %v689, %v668
        %v691 = vmul.f32 %v679, %v672
        %692 = vadd.xlane.f32.xlu0 %v691
        %v693 = vpop.xlane.xlu0 %692
        %v694 = vsel %vm682, %v693, %v672
        %v695 = vmul.f32 %v679, %v676
        %696 = vadd.xlane.f32.xlu0 %v695
        %v697 = vpop.xlane.xlu0 %696
        %v698 = vsel %vm682, %v697, %v676
        %v699 = vld [vmem:[#allocation2] ss:$0 sm:$0xff]
        %v700 = vxor.u32 %v699, 2147483648
        %v701 = vlaneseq
        %v702 = vand.u32 %v701, 127
        %vm703 = vcmp.eq.s32.totalorder %v702, 0
        %v704 = vmul.f32 %v700, %v686
        %705 = vadd.xlane.f32.xlu0 %v704
        %v706 = vpop.xlane.xlu0 %705
        %v707 = vsel %vm703, %v706, %v686
        %v708 = vmul.f32 %v700, %v690
        %709 = vadd.xlane.f32.xlu0 %v708
        %v710 = vpop.xlane.xlu0 %709
        %v711 = vsel %vm703, %v710, %v690
        %v712 = vmul.f32 %v700, %v694
        %713 = vadd.xlane.f32.xlu0 %v712
        %v714 = vpop.xlane.xlu0 %713
        %v715 = vsel %vm703, %v714, %v694
        %v716 = vmul.f32 %v700, %v698
        %717 = vadd.xlane.f32.xlu0 %v716
        %v718 = vpop.xlane.xlu0 %717
        %v719 = vsel %vm703, %v718, %v698
        %v720 = vrcp.pop %v132
        %v721 = vmul.f32 %v707, %v720
        %vm722 = vweird.f32 %v132
        %v723 = vsel %vm722, %v707, %v721
        %724 = vst [vmem:[%s121] sm:$0xff] %v723
        %v725 = vrcp.pop %v148
        %v726 = vmul.f32 %v711, %v725
        %vm727 = vweird.f32 %v148
        %v728 = vsel %vm727, %v711, %v726
        %s729 = scalar_lea.vmem %s121, 8 [#allocation1]
        %730 = vst [vmem:[%s729] sm:$0xff] %v728
        %v731 = vrcp.pop %v164
        %v732 = vmul.f32 %v715, %v731
        %vm733 = vweird.f32 %v164
        %v734 = vsel %vm733, %v715, %v732
        %s735 = scalar_lea.vmem %s121, 16 [#allocation1]
        %736 = vst [vmem:[%s735] sm:$0xff] %v734
        %v737 = vrcp.pop %v180
        %v738 = vmul.f32 %v719, %v737
        %vm739 = vweird.f32 %v180
        %v740 = vsel %vm739, %v719, %v738
        %s741 = scalar_lea.vmem %s121, 24 [#allocation1]
        %742 = vst [vmem:[%s741] sm:$0xff] %v740
        %s743 = sand.u32 %s8, 1
        %s744 = sand.u32 %s8, 1
        %s745 = smul.addr %s744, 32
        %s746 = scalar_lea.vmem [#allocation1], %s745
        %s747 = sadd.s32 %s17, %s16
        %s748 = smul.addr %s15, 4
        %s749 = sadd.s32 %s747, %s748
        %s750 = smul.addr %s14, 4
        %s751 = sadd.s32 %s749, %s750
        %s752 = smul.addr %s751, 8
        %s753 = scalar_lea.vmem %s1, %s752
        // Predicated region
        $region55: #{custom-call.9} parent=53 // pred_check
          _
        $region56: #{custom-call.9} parent=53 // pred_check_branch
          %755 = sbr.rel (0) target = $region58
        $region57: #{custom-call.9} parent=53 // pred_region
          // Predicated region
          $region59: #{custom-call.9} parent=57 // pred_check
            _
          $region60: #{custom-call.9} parent=57 // pred_check_branch
            %757 = sbr.rel (0) target = $region62
          $region61: #{custom-call.9} parent=57 // pred_region
            // Predicated region
            $region74: #{custom-call.9} parent=61 // pred_check
              _
            $region75: #{custom-call.9} parent=61 // pred_check_branch
              %778 = sbr.rel (0) target = $region77
            $region76: #{custom-call.9} parent=61 // pred_region
              loop: start=0, step=1, limit=1
              $region78: #{custom-call.9} parent=76 // loop_pre_header
                _
              $region79: #{custom-call.9} parent=76 // loop_header
                %s780 = sphi 0, %s784
                %p781 = scmp.ge.s32.totalorder %s780, 1
                %s785 = sphi %s746, %s746
                %s786 = sphi %s753, %s753
              $region80: #{custom-call.9} parent=76 // loop_header_branch
                %783 = sbr.rel (%p781) target = $region84
              $region81: #{custom-call.9} parent=76 // loop_body
                %v787 = vld [vmem:[%s785] sm:$0xff]
                %788 = vst [vmem:[%s786] sm:$0xff] %v787
                %v789 = vld [vmem:[%s785 + $0x8] sm:$0xff]
                %790 = vst [vmem:[%s786 + $0x8] sm:$0xff] %v789
                %v791 = vld [vmem:[%s785 + $0x10] sm:$0xff]
                %792 = vst [vmem:[%s786 + $0x10] sm:$0xff] %v791
                %v793 = vld [vmem:[%s785 + $0x18] sm:$0xff]
                %794 = vst [vmem:[%s786 + $0x18] sm:$0xff] %v793
              $region82: #{custom-call.9} parent=76 // loop_footer
                %s784 = sadd.s32 1, %s780
              $region83: #{custom-call.9} parent=76 // loop_footer_branch
                %779 = sbr.rel target = $region79
              $region84: #{custom-call.9} parent=76 // loop_exit
                _
            $region77: #{custom-call.9} parent=61 // pred_fallthru
              _
            // Predicated region
            $region85: #{custom-call.9} parent=61 // pred_check
              _
            $region86: #{custom-call.9} parent=61 // pred_check_branch
              %796 = sbr.rel target = $region88
            $region87: #{custom-call.9} parent=61 // pred_region
              _
            $region88: #{custom-call.9} parent=61 // pred_fallthru
              _
          $region62: #{custom-call.9} parent=57 // pred_fallthru
            _
          // Predicated region
          $region63: #{custom-call.9} parent=57 // pred_check
            _
          $region64: #{custom-call.9} parent=57 // pred_check_branch
            %759 = sbr.rel target = $region66
          $region65: #{custom-call.9} parent=57 // pred_region
            loop: start=0, step=1, limit=1
            $region67: #{custom-call.9} parent=65 // loop_pre_header
              _
            $region68: #{custom-call.9} parent=65 // loop_header
              %s762 = sphi 0, %s766
              %p763 = scmp.ge.s32.totalorder %s762, 1
              %s767 = sphi %s746, %s746
              %s768 = sphi %s753, %s753
            $region69: #{custom-call.9} parent=65 // loop_header_branch
              %765 = sbr.rel (%p763) target = $region73
            $region70: #{custom-call.9} parent=65 // loop_body
              %v769 = vld [vmem:[%s767] sm:$0xff]
              %770 = vst [vmem:[%s768] sm:$0xff] %v769
              %v771 = vld [vmem:[%s767 + $0x8] sm:$0xff]
              %772 = vst [vmem:[%s768 + $0x8] sm:$0xff] %v771
              %v773 = vld [vmem:[%s767 + $0x10] sm:$0xff]
              %774 = vst [vmem:[%s768 + $0x10] sm:$0xff] %v773
              %v775 = vld [vmem:[%s767 + $0x18] sm:$0xff]
              %776 = vst [vmem:[%s768 + $0x18] sm:$0xff] %v775
            $region71: #{custom-call.9} parent=65 // loop_footer
              %s766 = sadd.s32 1, %s762
            $region72: #{custom-call.9} parent=65 // loop_footer_branch
              %761 = sbr.rel target = $region68
            $region73: #{custom-call.9} parent=65 // loop_exit
              _
          $region66: #{custom-call.9} parent=57 // pred_fallthru
            _
        $region58: #{custom-call.9} parent=53 // pred_fallthru
          _
        %797 = vnop
      $region54: #{custom-call.9} parent=5 // pred_fallthru
        _
      %p798 = scmp.le.s32.totalorder 2, %s3
      // Predicated region
      $region89: #{custom-call.9} parent=5 // pred_check
        %p799 = pneg %p798
      $region90: #{custom-call.9} parent=5 // pred_check_branch
        %801 = sbr.rel (%p799) target = $region92
      $region91: #{custom-call.9} parent=5 // pred_region
        %s802 = ssub.s32 %s3, 2
        %s803 = sand.u32 %s9, 1
        %s804 = sand.u32 %s9, 1
        %s805 = smul.addr %s804, 32
        %s806 = scalar_lea.vmem [#allocation1], %s805
      $region92: #{custom-call.9} parent=5 // pred_fallthru
        _
    $region6: #{custom-call.9} parent=1 // loop_footer
      %s7 = sadd.s32 1, %s3
    $region7: #{custom-call.9} parent=1 // loop_footer_branch
      %2 = sbr.rel target = $region3
    $region8: #{custom-call.9} parent=1 // loop_exit
      _

// kernel: fixed_point_layer_forward.3
$region0: #{fixed_point_layer_forward.3}
  #allocation0 [shape = 'u32[]', space=smem, size = 0x4, offset = 0x4, fixed_abs, tag = 'smem constant byte address 0x4 - core index']
  #allocation1 [shape = 'u32[144,128]{1,0:T(1,128)}', space=vmem, size = 0x12000, scoped, tag = 'internal scratch']
  %s0 = inlined_call_operand.vmem [shape: f32[4,32], index: 0, kind: input, shape index: {}]
  %s1 = inlined_call_operand.vmem [shape: f32[4,32], index: 1, kind: input, shape index: {}]
  %s2 = inlined_call_operand.vmem [shape: f32[32,32], index: 2, kind: input, shape index: {}]
  %s3 = inlined_call_operand.hbm [shape: f32[4,32], index: 3, kind: output, shape index: {}]
  %s4 = sld [smem:[#allocation0]]
  $region22: #{fixed_point_layer_forward.3} parent=0
    _
  %s6 = ssub.s32 1, %s4
  %s7 = scalar_select 0, %s6, %s4
  $region1: #{fixed_point_layer_forward.3} parent=0
    #allocation2 [shape = 'u8[2048]{0}', space=vmem, size = 0x800, scoped, tag = 'output window, operand 0, single buffered']
    #allocation3 [shape = 's32[1]{0}', space=sflag, size = 0x4, scoped, tag = 'scoped memory for fixed_point_layer_forward.3']
    %8 = vsyncpa [#allocation3], 0
    // Predicated region
    $region2: #{fixed_point_layer_forward.3} parent=1 // pred_check
      _
    $region3: #{fixed_point_layer_forward.3} parent=1 // pred_check_branch
      %10 = sbr.rel (0) target = $region5
    $region4: #{fixed_point_layer_forward.3} parent=1 // pred_region
      _
    $region5: #{fixed_point_layer_forward.3} parent=1 // pred_fallthru
      _
    // Predicated region
    $region6: #{fixed_point_layer_forward.3} parent=1 // pred_check
      _
    $region7: #{fixed_point_layer_forward.3} parent=1 // pred_check_branch
      %12 = sbr.rel (0) target = $region9
    $region8: #{fixed_point_layer_forward.3} parent=1 // pred_region
      _
    $region9: #{fixed_point_layer_forward.3} parent=1 // pred_fallthru
      _
    // Predicated region
    $region10: #{fixed_point_layer_forward.3} parent=1 // pred_check
      _
    $region11: #{fixed_point_layer_forward.3} parent=1 // pred_check_branch
      %14 = sbr.rel (0) target = $region13
    $region12: #{fixed_point_layer_forward.3} parent=1 // pred_region
      _
    $region13: #{fixed_point_layer_forward.3} parent=1 // pred_fallthru
      _
    %v15 = vld [vmem:[%s0] sm:$0xf]
    %v16 = vld [vmem:[%s2] sm:$0xff]
    %v17 = vld [vmem:[%s2 + $0x8] sm:$0xff]
    %v18 = vld [vmem:[%s2 + $0x10] sm:$0xff]
    %v19 = vld [vmem:[%s2 + $0x18] sm:$0xff]
    %v20 = vld [vmem:[%s1] sm:$0xf]
    %vm21 = vcmask 261120
    %v23 = vsel %vm21, %v15, 0
    %v26 = vsel %vm21, %v16, 0
    %v29 = vsel %vm21, %v17, 0
    %v32 = vsel %vm21, %v18, 0
    %v35 = vsel %vm21, %v19, 0
    %37 = vmatprep.subr.mxu0 0.0
    %38 = vmatpush1.xpose.msra.mxu0 %v26
    %39 = vmatprep.subr.mxu0 0.0
    %40 = vmatpush1.xpose.msra.mxu0 %v29
    %41 = vmatprep.subr.mxu0 0.0
    %42 = vmatpush1.xpose.msra.mxu0 %v32
    %43 = vmatprep.subr.mxu0 0.0
    %44 = vmatpush1.xpose.msra.mxu0 %v35
    %45 = vmatprep.subr.mxu0 0.0
    %46 = vmatpush1.xpose.msra.mxu0 0.0
    %47 = vmatprep.subr.mxu0 0.0
    %48 = vmatpush1.xpose.msra.mxu0 0.0
    %49 = vmatprep.subr.mxu0 0.0
    %50 = vmatpush1.xpose.msra.mxu0 0.0
    %51 = vmatprep.subr.mxu0 0.0
    %52 = vmatpush1.xpose.msra.mxu0 0.0
    %53 = vmatprep.subr.mxu0 0.0
    %54 = vmatpush1.xpose.msra.mxu0 0.0
    %55 = vmatprep.subr.mxu0 0.0
    %56 = vmatpush1.xpose.msra.mxu0 0.0
    %57 = vmatprep.subr.mxu0 0.0
    %58 = vmatpush1.xpose.msra.mxu0 0.0
    %59 = vmatprep.subr.mxu0 0.0
    %60 = vmatpush1.xpose.msra.mxu0 0.0
    %61 = vmatprep.subr.mxu0 0.0
    %62 = vmatpush1.xpose.msra.mxu0 0.0
    %63 = vmatprep.subr.mxu0 0.0
    %64 = vmatpush1.xpose.msra.mxu0 0.0
    %65 = vmatprep.subr.mxu0 0.0
    %66 = vmatpush1.xpose.msra.mxu0 0.0
    %67 = vmatprep.subr.mxu0 0.0
    %68 = vmatpush1.xpose.msra.mxu0 0.0
    %69 = vmatprep.subr.mxu0 0.0
    %70 = vmatpush1.xpose.msra.mxu0 0.0
    %71 = vmatprep.subr.mxu0 0.0
    %72 = vmatpush1.xpose.msra.mxu0 0.0
    %73 = vmatprep.subr.mxu0 0.0
    %74 = vmatpush1.xpose.msra.mxu0 0.0
    %75 = vmatprep.subr.mxu0 0.0
    %76 = vmatpush1.xpose.msra.mxu0 0.0
    %77 = vmatprep.subr.mxu0 0.0
    %78 = vmatpush1.xpose.msra.mxu0 0.0
    %79 = vmatprep.subr.mxu0 0.0
    %80 = vmatpush1.xpose.msra.mxu0 0.0
    %81 = vmatprep.subr.mxu0 0.0
    %82 = vmatpush1.xpose.msra.mxu0 0.0
    %83 = vmatprep.subr.mxu0 0.0
    %84 = vmatpush1.xpose.msra.mxu0 0.0
    %85 = vmatprep.subr.mxu0 0.0
    %86 = vmatpush1.xpose.msra.mxu0 0.0
    %87 = vmatprep.subr.mxu0 0.0
    %88 = vmatpush1.xpose.msra.mxu0 0.0
    %89 = vmatprep.subr.mxu0 0.0
    %90 = vmatpush1.xpose.msra.mxu0 0.0
    %91 = vmatprep.subr.mxu0 0.0
    %92 = vmatpush1.xpose.msra.mxu0 0.0
    %93 = vmatprep.subr.mxu0 0.0
    %94 = vmatpush1.xpose.msra.mxu0 0.0
    %95 = vmatprep.subr.mxu0 0.0
    %96 = vmatpush1.xpose.msra.mxu0 0.0
    %97 = vmatprep.subr.mxu0 0.0
    %98 = vmatpush1.xpose.msra.mxu0 0.0
    %99 = vmatprep.subr.mxu0 0.0
    %100 = vmatpush1.xpose.msra.mxu0 0.0
    %101 = vmatprep.mubr.f32.mxu0 0.0
    %102 = vmatmul.mubr.f32.gmra.mrb[0].mxu0 %v23
    %v103 = vpop.f32.mrb[0].mxu0
    %v104 = vadd.f32 %v20, %v103
    %v105 = vpop.f32.mrb[0].mxu0
    %106 = vdwg.mxu0
    %v107 = vtanh.pop %v104
    %vm108 = vcmask 257024
    %109 = vst.msk [vmem:[#allocation2] sm:$0xf] %vm108, %v107
    // Predicated region
    $region14: #{fixed_point_layer_forward.3} parent=1 // pred_check
      _
    $region15: #{fixed_point_layer_forward.3} parent=1 // pred_check_branch
      %111 = sbr.rel (0) target = $region17
    $region16: #{fixed_point_layer_forward.3} parent=1 // pred_region
      %s113 = ssub.s32 64, 64
      %114 = vsyncadd [#allocation3], %s113
      %s116 = sshll.u32 [#allocation2], 4
      %s117 = int_to_ptr.vmem [resolvable:$true] %s116
      %119 = dma.vmem_to_hbm [thread:$0]  %s117, 64, %s3, [#allocation3]
    $region17: #{fixed_point_layer_forward.3} parent=1 // pred_fallthru
      _
    // Predicated region
    $region18: #{fixed_point_layer_forward.3} parent=1 // pred_check
      _
    $region19: #{fixed_point_layer_forward.3} parent=1 // pred_check_branch
      %121 = sbr.rel (0) target = $region21
    $region20: #{fixed_point_layer_forward.3} parent=1 // pred_region
      %122 = dma.done [#allocation3], 64
    $region21: #{fixed_point_layer_forward.3} parent=1 // pred_fallthru
      _
    %123 = vsyncpa [#allocation3], 1

</llo_original>
